<compile_context>
chip_gen: v7x
topology: tpu7x:2x2x1
jax: 0.10.0
libtpu: 0.0.40
codegen_flags: <defaults>
</compile_context>

<pallas_src>
import functools

import jax
import jax.numpy as jnp
from jax import lax
from jax.experimental import pallas as pl
from jax.experimental.pallas import tpu as pltpu


_TILE = 512                      # adj row / contraction tile for large graphs
_VMEM_LIMIT = 48 * 1024 * 1024   # budgeted against v7x's 64 MiB physical VMEM


def _round_up(n, m):
    return ((n + m - 1) // m) * m


def _choose_tiles(num_nodes):
    """Returns (padded_num_nodes, row_tile, contraction_tile)."""
    if num_nodes <= _TILE:
        m_pad = _round_up(num_nodes, 8)
        return m_pad, m_pad, m_pad
    m_pad = _round_up(num_nodes, _TILE)
    return m_pad, _TILE, _TILE


# ----------------------------- Pallas kernels --------------------------------

def _hop_linear_kernel(x_ref, w_ref, b_ref, o_ref):
    """y = x @ W_cat + b_cat  (all hop linears fused into one matmul)."""
    o_ref[...] = (jnp.dot(x_ref[...], w_ref[...],
                          preferred_element_type=jnp.float32)
                  + b_ref[...]).astype(o_ref.dtype)


def _acc_init_and_step(adj_ref, yk_ref, acc_ref, *, col_start, aligned):
    """Accumulate one adj (tm, tk) tile against a y (tk, N) tile into f32 acc."""
    @pl.when(pl.program_id(1) == 0)
    def _():
        acc_ref[...] = jnp.zeros_like(acc_ref)

    if aligned:
        # 128-aligned hop boundary: only the suffix columns need propagation,
        # so skip the wasted MXU flops on the prefix entirely.
        acc_ref[:, col_start:] += jnp.dot(
            adj_ref[...], yk_ref[:, col_start:],
            preferred_element_type=jnp.float32)
    else:
        acc_ref[...] += jnp.dot(adj_ref[...], yk_ref[...],
                                preferred_element_type=jnp.float32)


def _hop_combine(acc_ref, yrow_ref, *, col_start, aligned, n):
    """Columns >= col_start take the propagated accumulator, earlier columns
    pass the previous value through (chained-hop semantics). f32 result."""
    y_prev = yrow_ref[...].astype(jnp.float32)
    if aligned:
        return jnp.concatenate([y_prev[:, :col_start], acc_ref[:, col_start:]],
                               axis=1)
    col = lax.broadcasted_iota(jnp.int32, (1, n), 1)   # (1, N), broadcast in where
    return jnp.where(col >= col_start, acc_ref[...], y_prev)


def _prop_kernel(adj_ref, yk_ref, yrow_ref, o_ref, acc_ref,
                 *, col_start, aligned, n):
    """Intermediate hop: propagate suffix columns, store bf16 y_next."""
    _acc_init_and_step(adj_ref, yk_ref, acc_ref,
                       col_start=col_start, aligned=aligned)

    @pl.when(pl.program_id(1) == pl.num_programs(1) - 1)
    def _():
        y = _hop_combine(acc_ref, yrow_ref, col_start=col_start,
                         aligned=aligned, n=n)
        o_ref[...] = y.astype(o_ref.dtype)


def _prop_bn_relu_kernel(adj_ref, yk_ref, yrow_ref, scale_ref, shift_ref,
                         o_ref, acc_ref, *, col_start, aligned, n):
    """Last hop of a hidden layer: propagate + fused eval-BN + ReLU epilogue."""
    _acc_init_and_step(adj_ref, yk_ref, acc_ref,
                       col_start=col_start, aligned=aligned)

    @pl.when(pl.program_id(1) == pl.num_programs(1) - 1)
    def _():
        y = _hop_combine(acc_ref, yrow_ref, col_start=col_start,
                         aligned=aligned, n=n)
        o_ref[...] = jnp.maximum(y * scale_ref[...] + shift_ref[...],
                                 0.0).astype(o_ref.dtype)


def _prop_final_kernel(adj_ref, yk_ref, yrow_ref, wf_ref, bf_ref,
                       o_ref, acc_ref, *, col_start, aligned, n):
    """Last hop of the final layer: propagate + fused final Linear projection."""
    _acc_init_and_step(adj_ref, yk_ref, acc_ref,
                       col_start=col_start, aligned=aligned)

    @pl.when(pl.program_id(1) == pl.num_programs(1) - 1)
    def _():
        y = _hop_combine(acc_ref, yrow_ref, col_start=col_start,
                         aligned=aligned, n=n)
        o_ref[...] = (jnp.dot(y.astype(wf_ref.dtype), wf_ref[...],
                              preferred_element_type=jnp.float32)
                      + bf_ref[...]).astype(o_ref.dtype)


# ------------------------------ Pallas wrappers -------------------------------

def fused_hop_linear(x, w, b, *, tm):
    """y = x @ W_cat + b_cat, tiled over rows ('parallel')."""
    # TODO(synk): tile the K (feature) contraction too for very wide inputs;
    # for MixHop widths (<= a few hundred) a resident K is fine.
    M, K = x.shape
    N = w.shape[1]
    flops = 2 * M * K * N
    bytes_accessed = 2 * M * K + 2 * K * N + 4 * N + 2 * M * N
    return pl.pallas_call(
        _hop_linear_kernel,
        out_shape=jax.ShapeDtypeStruct((M, N), jnp.bfloat16),
        grid=(M // tm,),
        in_specs=[
            pl.BlockSpec((tm, K), lambda i: (i, 0)),   # x rows (bf16)
            pl.BlockSpec((K, N), lambda i: (0, 0)),    # W_cat (bf16, resident)
            pl.BlockSpec((1, N), lambda i: (0, 0)),    # b_cat (f32)
        ],
        out_specs=pl.BlockSpec((tm, N), lambda i: (i, 0)),
        compiler_params=pltpu.CompilerParams(
            dimension_semantics=("parallel",),
            vmem_limit_bytes=_VMEM_LIMIT),
        cost_estimate=pl.CostEstimate(flops=int(flops), transcendentals=0,
                                      bytes_accessed=int(bytes_accessed)),
    )(x, w, b.reshape(1, N))


def propagate_step(y, adj, *, col_start, tm, tk, epilogue="none",
                   scale=None, shift=None, wf=None, bf=None):
    """One chained adjacency application: columns >= col_start get adj_t @ y,
    earlier columns pass through.  Optional fused epilogue on the finalize.

    Grid = (row tiles 'parallel', contraction tiles 'arbitrary'); adj is
    streamed in (tm, tk) tiles (auto double-buffered DMA), the f32 accumulator
    lives in VMEM scratch.
    """
    # TODO(synk): when adj fits on-chip (small M), pin it as a resident VMEM
    # buffer (pl.ANY + one-time copy) and reuse it across all hops / layers
    # instead of re-streaming it from HBM per call.
    M, N = y.shape
    n_row, n_k = M // tm, M // tk
    aligned = col_start > 0 and (col_start % 128 == 0)

    in_specs = [
        pl.BlockSpec((tm, tk), lambda i, k: (i, k)),   # adj tile (bf16)
        pl.BlockSpec((tk, N), lambda i, k: (k, 0)),    # y contraction rows
        pl.BlockSpec((tm, N), lambda i, k: (i, 0)),    # y output rows (prefix)
    ]
    args = [adj, y, y]

    cols = (N - col_start) if aligned else N
    flops = 2 * M * M * cols
    bytes_accessed = 2 * M * M + 2 * M * N * (n_row + 1)

    if epilogue == "bn_relu":
        in_specs += [pl.BlockSpec((1, N), lambda i, k: (0, 0)),
                     pl.BlockSpec((1, N), lambda i, k: (0, 0))]
        args += [scale.reshape(1, N), shift.reshape(1, N)]
        kern = functools.partial(_prop_bn_relu_kernel, col_start=col_start,
                                 aligned=aligned, n=N)
        out_shape = jax.ShapeDtypeStruct((M, N), jnp.bfloat16)
        out_spec = pl.BlockSpec((tm, N), lambda i, k: (i, 0))
        flops += 3 * M * N
        bytes_accessed += 2 * M * N + 8 * N
    elif epilogue == "final":
        Nout = wf.shape[1]
        in_specs += [pl.BlockSpec((N, Nout), lambda i, k: (0, 0)),
                     pl.BlockSpec((1, Nout), lambda i, k: (0, 0))]
        args += [wf, bf.reshape(1, Nout)]
        kern = functools.partial(_prop_final_kernel, col_start=col_start,
                                 aligned=aligned, n=N)
        out_shape = jax.ShapeDtypeStruct((M, Nout), jnp.float32)
        out_spec = pl.BlockSpec((tm, Nout), lambda i, k: (i, 0))
        flops += 2 * M * N * Nout
        bytes_accessed += 4 * M * Nout + 2 * N * Nout
    else:
        kern = functools.partial(_prop_kernel, col_start=col_start,
                                 aligned=aligned, n=N)
        out_shape = jax.ShapeDtypeStruct((M, N), jnp.bfloat16)
        out_spec = pl.BlockSpec((tm, N), lambda i, k: (i, 0))
        bytes_accessed += 2 * M * N

    return pl.pallas_call(
        kern,
        out_shape=out_shape,
        grid=(n_row, n_k),
        in_specs=in_specs,
        out_specs=out_spec,
        scratch_shapes=[pltpu.VMEM((tm, N), jnp.float32)],
        compiler_params=pltpu.CompilerParams(
            dimension_semantics=("parallel", "arbitrary"),
            vmem_limit_bytes=_VMEM_LIMIT),
        cost_estimate=pl.CostEstimate(flops=int(flops), transcendentals=0,
                                      bytes_accessed=int(bytes_accessed)),
    )(*args)


# ------------------------------ JAX glue --------------------------------------

def gcn_norm_dense_adj_t(edge_index, num_nodes, dtype=jnp.float32):
    """Dense equivalent of torch_geometric gcn_norm (improved=False,
    add_self_loops=True) followed by adj_t = transpose(normalized A)."""
    row, col = edge_index[0], edge_index[1]
    A = jnp.zeros((num_nodes, num_nodes), dtype).at[row, col].set(1.0)
    diag = jnp.diag(A)
    A = A + jnp.diag(jnp.where(diag == 0, 1.0, 0.0).astype(dtype))
    deg = A.sum(axis=0)            # flow = source_to_target: degree over col
    dinv = jnp.where(deg > 0, 1.0 / jnp.sqrt(deg), 0.0)
    A_norm = dinv[:, None] * A * dinv[None, :]
    return A_norm.T                # adj_t


def _linear_init(key, fan_in, fan_out):
    kw, kb = jax.random.split(key)
    bound = 1.0 / jnp.sqrt(jnp.float32(fan_in))
    W = jax.random.uniform(kw, (fan_in, fan_out), jnp.float32, -bound, bound)
    b = jax.random.uniform(kb, (fan_out,), jnp.float32, -bound, bound)
    return W, b


def init_mixhop_params(key, in_channels, hidden_channels, out_channels, hops, L):
    params = {"convs": [], "bns": [], "final": None}
    dims_in = in_channels
    keys = jax.random.split(key, L + 1)
    for l in range(L):
        dims_out = hidden_channels if l < L - 1 else out_channels
        lkeys = jax.random.split(keys[l], hops + 1)
        layer = [_linear_init(lkeys[j], dims_in, dims_out) for j in range(hops + 1)]
        params["convs"].append(layer)
        if l < L - 1:
            C = hidden_channels * (hops + 1)
            # BatchNorm1d defaults: gamma=1, beta=0, running stats (0, 1)
            params["bns"].append(
                (jnp.ones((C,)), jnp.zeros((C,)), jnp.zeros((C,)), jnp.ones((C,)))
            )
        dims_in = dims_out * (hops + 1)
    params["final"] = _linear_init(keys[L], out_channels * (hops + 1), out_channels)
    return params


def pack_mixhop_params(params, *, in_channels, hops, bn_eps=1e-5):
    """One-time packing: concat hop weights, pad to 128 lanes, fold eval-BN into
    scale/shift, cast MXU operands to bf16.  Hoisted out of the forward path."""
    layers = []
    hop_dims = []
    L = len(params["convs"])
    prev_width = in_channels          # width of the activation fed to layer l
    for l in range(L):
        lins = params["convs"][l]
        D = int(lins[0][0].shape[1])
        hop_dims.append(D)
        W_cat = jnp.concatenate([W for W, _ in lins], axis=1)
        b_cat = jnp.concatenate([b for _, b in lins])
        Ncat = W_cat.shape[1]
        Npad = _round_up(Ncat, 128)
        if W_cat.shape[0] < prev_width:          # zero rows for lane-padded input
            W_cat = jnp.pad(W_cat, ((0, prev_width - W_cat.shape[0]), (0, 0)))
        W_cat = jnp.pad(W_cat, ((0, 0), (0, Npad - Ncat)))
        b_cat = jnp.pad(b_cat, (0, Npad - Ncat))
        layer = {"w": W_cat.astype(jnp.bfloat16), "b": b_cat.astype(jnp.float32)}
        if l < L - 1:
            gamma, beta, rmean, rvar = params["bns"][l]
            scale = gamma / jnp.sqrt(rvar + bn_eps)
            shift = beta - rmean * scale
            layer["scale"] = jnp.pad(scale, (0, Npad - Ncat),
                                     constant_values=1.0).astype(jnp.float32)
            layer["shift"] = jnp.pad(shift, (0, Npad - Ncat)).astype(jnp.float32)
        else:
            Wf, bf = params["final"]
            Nout = Wf.shape[1]
            Nout_pad = _round_up(Nout, 128)
            Wf_p = jnp.pad(Wf, ((0, Npad - Wf.shape[0]), (0, Nout_pad - Nout)))
            bf_p = jnp.pad(bf, (0, Nout_pad - Nout))
            layer["wf"] = Wf_p.astype(jnp.bfloat16)
            layer["bf"] = bf_p.astype(jnp.float32)
        layers.append(layer)
        prev_width = Npad
    return tuple(layers), tuple(hop_dims)


def mixhop_forward(x, adj, layers, *, hops, hop_dims, tm, tk,
                   num_nodes, out_channels):
    """Eval-mode MixHop forward.  x: (M_pad, K) bf16, adj: (M_pad, M_pad) bf16
    (normalized adj_t, row/col zero-padded), layers: packed params."""
    assert hops >= 1
    h = x
    L = len(layers)
    for l, layer in enumerate(layers):
        y = fused_hop_linear(h, layer["w"], layer["b"], tm=tm)
        D = hop_dims[l]
        for t in range(1, hops + 1):
            col_start = t * D
            if t < hops:
                y = propagate_step(y, adj, col_start=col_start, tm=tm, tk=tk)
            elif l < L - 1:
                y = propagate_step(y, adj, col_start=col_start, tm=tm, tk=tk,
                                   epilogue="bn_relu",
                                   scale=layer["scale"], shift=layer["shift"])
            else:
                y = propagate_step(y, adj, col_start=col_start, tm=tm, tk=tk,
                                   epilogue="final",
                                   wf=layer["wf"], bf=layer["bf"])
        h = y
        # dropout: identity in eval mode (training=False)
    return h[:num_nodes, :out_channels]


# --------------------------------- main ---------------------------------------

if __name__ == "__main__":
    key = jax.random.PRNGKey(0)
    k_x, k_adj, k_params = jax.random.split(key, 3)

    # small, MixHop-consistent shapes
    num_nodes = 64
    in_channels = 16
    hidden_channels = 32
    out_channels = 8
    hops = 2
    L = 3  # total MixHopLayers (1 input + (L-2) hidden + 1 output)

    # node features
    x = jax.random.normal(k_x, (num_nodes, in_channels), jnp.float32)

    # random undirected graph without self loops or duplicate edges
    mask = jax.random.uniform(k_adj, (num_nodes, num_nodes)) < 0.05
    mask = jnp.logical_or(mask, mask.T)
    mask = jnp.logical_and(mask, ~jnp.eye(num_nodes, dtype=bool))
    rows, cols = jnp.nonzero(mask)
    edge_index = jnp.stack([rows, cols]).astype(jnp.int32)  # (2, E)

    params = init_mixhop_params(
        k_params, in_channels, hidden_channels, out_channels, hops, L
    )

    # One-time (hoisted) packing: weights + BN folding + dense normalized adj_t.
    layers, hop_dims = pack_mixhop_params(params, in_channels=in_channels,
                                          hops=hops)
    adj = gcn_norm_dense_adj_t(edge_index, num_nodes, jnp.float32)

    m_pad, tm, tk = _choose_tiles(num_nodes)
    adj_p = jnp.pad(adj, ((0, m_pad - num_nodes),
                          (0, m_pad - num_nodes))).astype(jnp.bfloat16)
    x_p = jnp.pad(x, ((0, m_pad - num_nodes), (0, 0))).astype(jnp.bfloat16)

    fwd = jax.jit(functools.partial(
        mixhop_forward, hops=hops, hop_dims=hop_dims, tm=tm, tk=tk,
        num_nodes=num_nodes, out_channels=out_channels))

    out = fwd(x_p, adj_p, layers)
    out = jax.block_until_ready(out)

    assert out.shape == (num_nodes, out_channels), out.shape
    assert jnp.all(jnp.isfinite(out))
    print("KERNEL_OK")
</pallas_src>

<mosaic_0001>
module attributes {stable_mosaic.version = 11 : i64} {
  func.func @_prop_kernel(%arg0: i32, %arg1: i32, %arg2: memref<64x64xbf16, #tpu.memory_space<vmem>>, %arg3: memref<64x128xbf16, #tpu.memory_space<vmem>>, %arg4: memref<64x128xbf16, #tpu.memory_space<vmem>>, %arg5: memref<64x128xbf16, #tpu.memory_space<vmem>>, %arg6: memref<64x128xf32, #tpu.memory_space<vmem>>) attributes {dimension_semantics = [#tpu.dimension_semantics<parallel>, #tpu.dimension_semantics<arbitrary>], iteration_bounds = array<i64: 1, 1>, scalar_prefetch = 0 : i64, scratch_operands = 1 : i64, tpu.core_type = #tpu.core_type<tc>, window_params = [{transform_indices = @transform_0, window_bounds = array<i64: 64, 64>}, {transform_indices = @transform_1, window_bounds = array<i64: 64, 128>}, {transform_indices = @transform_2, window_bounds = array<i64: 64, 128>}, {transform_indices = @transform_3, window_bounds = array<i64: 64, 128>}]} {
    %c0_i32 = arith.constant 0 : i32
    %0 = arith.cmpi eq, %arg1, %c0_i32 : i32
    %1 = arith.extui %0 : i1 to i32
    %c0_i32_0 = arith.constant 0 : i32
    %2 = arith.cmpi ne, %1, %c0_i32_0 : i32
    scf.if %2 {
      %cst_10 = arith.constant 0.000000e+00 : f32
      %12 = vector.broadcast %cst_10 : f32 to vector<64x128xf32>
      %c0_11 = arith.constant 0 : index
      %c0_12 = arith.constant 0 : index
      %13 = vector.load %arg6[%c0_11, %c0_12] : memref<64x128xf32, #tpu.memory_space<vmem>>, vector<64x128xf32>
      tpu.vector_store %arg6[%c0_11, %c0_12], %12 {strides = array<i32>} : memref<64x128xf32, #tpu.memory_space<vmem>>, vector<64x128xf32>,
    } else {
    }
    %c0 = arith.constant 0 : index
    %c0_1 = arith.constant 0 : index
    %3 = vector.load %arg6[%c0, %c0_1] : memref<64x128xf32, #tpu.memory_space<vmem>>, vector<64x128xf32>
    %c0_2 = arith.constant 0 : index
    %c0_3 = arith.constant 0 : index
    %4 = vector.load %arg2[%c0_2, %c0_3] : memref<64x64xbf16, #tpu.memory_space<vmem>>, vector<64x64xbf16>
    %c0_4 = arith.constant 0 : index
    %c0_5 = arith.constant 0 : index
    %5 = vector.load %arg3[%c0_4, %c0_5] : memref<64x128xbf16, #tpu.memory_space<vmem>>, vector<64x128xbf16>
    %cst = arith.constant dense<0.000000e+00> : vector<64x128xf32>
    %6 = tpu.matmul %4, %5, %cst {dimension_numbers = #tpu.dot_dimension_numbers<[1], [0], [0], [1], [0, 0, 1, 1], [], []>} : vector<64x64xbf16>, vector<64x128xbf16>, vector<64x128xf32> -> vector<64x128xf32>
    %7 = arith.addf %3, %6 : vector<64x128xf32>
    %c0_6 = arith.constant 0 : index
    %c0_7 = arith.constant 0 : index
    %8 = vector.load %arg6[%c0_6, %c0_7] : memref<64x128xf32, #tpu.memory_space<vmem>>, vector<64x128xf32>
    tpu.vector_store %arg6[%c0_6, %c0_7], %7 {strides = array<i32>} : memref<64x128xf32, #tpu.memory_space<vmem>>, vector<64x128xf32>,
    %c0_i32_8 = arith.constant 0 : i32
    %9 = arith.cmpi eq, %arg1, %c0_i32_8 : i32
    %10 = arith.extui %9 : i1 to i32
    %c0_i32_9 = arith.constant 0 : i32
    %11 = arith.cmpi ne, %10, %c0_i32_9 : i32
    scf.if %11 {
      %c0_10 = arith.constant 0 : index
      %c0_11 = arith.constant 0 : index
      %12 = vector.load %arg4[%c0_10, %c0_11] : memref<64x128xbf16, #tpu.memory_space<vmem>>, vector<64x128xbf16>
      %13 = arith.extf %12 : vector<64x128xbf16> to vector<64x128xf32>
      %14 = tpu.iota {dimensions = array<i32: 1>} : vector<1x128xi32>
      %c32_i32 = arith.constant 32 : i32
      %15 = vector.broadcast %c32_i32 : i32 to vector<1x128xi32>
      %16 = arith.cmpi sge, %14, %15 : vector<1x128xi32>
      %c0_12 = arith.constant 0 : index
      %c0_13 = arith.constant 0 : index
      %17 = vector.load %arg6[%c0_12, %c0_13] : memref<64x128xf32, #tpu.memory_space<vmem>>, vector<64x128xf32>
      %18 = vector.shape_cast %16 : vector<1x128xi1> to vector<1x128xi1>
      %19 = vector.broadcast %18 : vector<1x128xi1> to vector<64x128xi1>
      %20 = arith.select %19, %17, %13 : vector<64x128xi1>, vector<64x128xf32>
      %21 = arith.truncf %20 : vector<64x128xf32> to vector<64x128xbf16>
      %c0_14 = arith.constant 0 : index
      %c0_15 = arith.constant 0 : index
      %22 = vector.load %arg5[%c0_14, %c0_15] : memref<64x128xbf16, #tpu.memory_space<vmem>>, vector<64x128xbf16>
      tpu.vector_store %arg5[%c0_14, %c0_15], %21 {strides = array<i32>} : memref<64x128xbf16, #tpu.memory_space<vmem>>, vector<64x128xbf16>,
    } else {
    }
    return
  }
  func.func @transform_0(%arg0: i32, %arg1: i32) -> (i32, i32) {
    %c0_i32 = arith.constant 0 : i32
    return %arg0, %arg1 : i32, i32
  }
  func.func @transform_1(%arg0: i32, %arg1: i32) -> (i32, i32) {
    %c0_i32 = arith.constant 0 : i32
    %c0_i32_0 = arith.constant 0 : i32
    return %arg1, %c0_i32 : i32, i32
  }
  func.func @transform_2(%arg0: i32, %arg1: i32) -> (i32, i32) {
    %c0_i32 = arith.constant 0 : i32
    %c0_i32_0 = arith.constant 0 : i32
    return %arg0, %c0_i32 : i32, i32
  }
  func.func @transform_3(%arg0: i32, %arg1: i32) -> (i32, i32) {
    %c0_i32 = arith.constant 0 : i32
    %c0_i32_0 = arith.constant 0 : i32
    return %arg0, %c0_i32 : i32, i32
  }
}

module attributes {stable_mosaic.version = 11 : i64} {
  func.func @_prop_bn_relu_kernel(%arg0: i32, %arg1: i32, %arg2: memref<64x64xbf16, #tpu.memory_space<vmem>>, %arg3: memref<64x128xbf16, #tpu.memory_space<vmem>>, %arg4: memref<64x128xbf16, #tpu.memory_space<vmem>>, %arg5: memref<1x128xf32, #tpu.memory_space<vmem>>, %arg6: memref<1x128xf32, #tpu.memory_space<vmem>>, %arg7: memref<64x128xbf16, #tpu.memory_space<vmem>>, %arg8: memref<64x128xf32, #tpu.memory_space<vmem>>) attributes {dimension_semantics = [#tpu.dimension_semantics<parallel>, #tpu.dimension_semantics<arbitrary>], iteration_bounds = array<i64: 1, 1>, scalar_prefetch = 0 : i64, scratch_operands = 1 : i64, tpu.core_type = #tpu.core_type<tc>, window_params = [{transform_indices = @transform_0, window_bounds = array<i64: 64, 64>}, {transform_indices = @transform_1, window_bounds = array<i64: 64, 128>}, {transform_indices = @transform_2, window_bounds = array<i64: 64, 128>}, {pipeline_mode = #tpu.pipeline_mode<synchronous>, transform_indices = @transform_3, window_bounds = array<i64: 1, 128>}, {pipeline_mode = #tpu.pipeline_mode<synchronous>, transform_indices = @transform_4, window_bounds = array<i64: 1, 128>}, {transform_indices = @transform_5, window_bounds = array<i64: 64, 128>}]} {
    %c0_i32 = arith.constant 0 : i32
    %0 = arith.cmpi eq, %arg1, %c0_i32 : i32
    %1 = arith.extui %0 : i1 to i32
    %c0_i32_0 = arith.constant 0 : i32
    %2 = arith.cmpi ne, %1, %c0_i32_0 : i32
    scf.if %2 {
      %cst_10 = arith.constant 0.000000e+00 : f32
      %12 = vector.broadcast %cst_10 : f32 to vector<64x128xf32>
      %c0_11 = arith.constant 0 : index
      %c0_12 = arith.constant 0 : index
      %13 = vector.load %arg8[%c0_11, %c0_12] : memref<64x128xf32, #tpu.memory_space<vmem>>, vector<64x128xf32>
      tpu.vector_store %arg8[%c0_11, %c0_12], %12 {strides = array<i32>} : memref<64x128xf32, #tpu.memory_space<vmem>>, vector<64x128xf32>,
    } else {
    }
    %c0 = arith.constant 0 : index
    %c0_1 = arith.constant 0 : index
    %3 = vector.load %arg8[%c0, %c0_1] : memref<64x128xf32, #tpu.memory_space<vmem>>, vector<64x128xf32>
    %c0_2 = arith.constant 0 : index
    %c0_3 = arith.constant 0 : index
    %4 = vector.load %arg2[%c0_2, %c0_3] : memref<64x64xbf16, #tpu.memory_space<vmem>>, vector<64x64xbf16>
    %c0_4 = arith.constant 0 : index
    %c0_5 = arith.constant 0 : index
    %5 = vector.load %arg3[%c0_4, %c0_5] : memref<64x128xbf16, #tpu.memory_space<vmem>>, vector<64x128xbf16>
    %cst = arith.constant dense<0.000000e+00> : vector<64x128xf32>
    %6 = tpu.matmul %4, %5, %cst {dimension_numbers = #tpu.dot_dimension_numbers<[1], [0], [0], [1], [0, 0, 1, 1], [], []>} : vector<64x64xbf16>, vector<64x128xbf16>, vector<64x128xf32> -> vector<64x128xf32>
    %7 = arith.addf %3, %6 : vector<64x128xf32>
    %c0_6 = arith.constant 0 : index
    %c0_7 = arith.constant 0 : index
    %8 = vector.load %arg8[%c0_6, %c0_7] : memref<64x128xf32, #tpu.memory_space<vmem>>, vector<64x128xf32>
    tpu.vector_store %arg8[%c0_6, %c0_7], %7 {strides = array<i32>} : memref<64x128xf32, #tpu.memory_space<vmem>>, vector<64x128xf32>,
    %c0_i32_8 = arith.constant 0 : i32
    %9 = arith.cmpi eq, %arg1, %c0_i32_8 : i32
    %10 = arith.extui %9 : i1 to i32
    %c0_i32_9 = arith.constant 0 : i32
    %11 = arith.cmpi ne, %10, %c0_i32_9 : i32
    scf.if %11 {
      %c0_10 = arith.constant 0 : index
      %c0_11 = arith.constant 0 : index
      %12 = vector.load %arg4[%c0_10, %c0_11] : memref<64x128xbf16, #tpu.memory_space<vmem>>, vector<64x128xbf16>
      %13 = arith.extf %12 : vector<64x128xbf16> to vector<64x128xf32>
      %14 = tpu.iota {dimensions = array<i32: 1>} : vector<1x128xi32>
      %c64_i32 = arith.constant 64 : i32
      %15 = vector.broadcast %c64_i32 : i32 to vector<1x128xi32>
      %16 = arith.cmpi sge, %14, %15 : vector<1x128xi32>
      %c0_12 = arith.constant 0 : index
      %c0_13 = arith.constant 0 : index
      %17 = vector.load %arg8[%c0_12, %c0_13] : memref<64x128xf32, #tpu.memory_space<vmem>>, vector<64x128xf32>
      %18 = vector.shape_cast %16 : vector<1x128xi1> to vector<1x128xi1>
      %19 = vector.broadcast %18 : vector<1x128xi1> to vector<64x128xi1>
      %20 = arith.select %19, %17, %13 : vector<64x128xi1>, vector<64x128xf32>
      %c0_14 = arith.constant 0 : index
      %c0_15 = arith.constant 0 : index
      %21 = vector.load %arg5[%c0_14, %c0_15] : memref<1x128xf32, #tpu.memory_space<vmem>>, vector<1x128xf32>
      %22 = vector.broadcast %21 : vector<1x128xf32> to vector<64x128xf32>
      %23 = arith.mulf %20, %22 : vector<64x128xf32>
      %c0_16 = arith.constant 0 : index
      %c0_17 = arith.constant 0 : index
      %24 = vector.load %arg6[%c0_16, %c0_17] : memref<1x128xf32, #tpu.memory_space<vmem>>, vector<1x128xf32>
      %25 = vector.broadcast %24 : vector<1x128xf32> to vector<64x128xf32>
      %26 = arith.addf %23, %25 : vector<64x128xf32>
      %cst_18 = arith.constant 0.000000e+00 : f32
      %27 = vector.broadcast %cst_18 : f32 to vector<64x128xf32>
      %28 = arith.maximumf %26, %27 : vector<64x128xf32>
      %29 = arith.truncf %28 : vector<64x128xf32> to vector<64x128xbf16>
      %c0_19 = arith.constant 0 : index
      %c0_20 = arith.constant 0 : index
      %30 = vector.load %arg7[%c0_19, %c0_20] : memref<64x128xbf16, #tpu.memory_space<vmem>>, vector<64x128xbf16>
      tpu.vector_store %arg7[%c0_19, %c0_20], %29 {strides = array<i32>} : memref<64x128xbf16, #tpu.memory_space<vmem>>, vector<64x128xbf16>,
    } else {
    }
    return
  }
  func.func @transform_0(%arg0: i32, %arg1: i32) -> (i32, i32) {
    %c0_i32 = arith.constant 0 : i32
    return %arg0, %arg1 : i32, i32
  }
  func.func @transform_1(%arg0: i32, %arg1: i32) -> (i32, i32) {
    %c0_i32 = arith.constant 0 : i32
    %c0_i32_0 = arith.constant 0 : i32
    return %arg1, %c0_i32 : i32, i32
  }
  func.func @transform_2(%arg0: i32, %arg1: i32) -> (i32, i32) {
    %c0_i32 = arith.constant 0 : i32
    %c0_i32_0 = arith.constant 0 : i32
    return %arg0, %c0_i32 : i32, i32
  }
  func.func @transform_3(%arg0: i32, %arg1: i32) -> (i32, i32) {
    %c0_i32 = arith.constant 0 : i32
    %c0_i32_0 = arith.constant 0 : i32
    %c0_i32_1 = arith.constant 0 : i32
    return %c0_i32, %c0_i32_0 : i32, i32
  }
  func.func @transform_4(%arg0: i32, %arg1: i32) -> (i32, i32) {
    %c0_i32 = arith.constant 0 : i32
    %c0_i32_0 = arith.constant 0 : i32
    %c0_i32_1 = arith.constant 0 : i32
    return %c0_i32, %c0_i32_0 : i32, i32
  }
  func.func @transform_5(%arg0: i32, %arg1: i32) -> (i32, i32) {
    %c0_i32 = arith.constant 0 : i32
    %c0_i32_0 = arith.constant 0 : i32
    return %arg0, %c0_i32 : i32, i32
  }
}

module attributes {stable_mosaic.version = 11 : i64} {
  func.func @_hop_linear_kernel(%arg0: i32, %arg1: memref<64x16xbf16, #tpu.memory_space<vmem>>, %arg2: memref<16x128xbf16, #tpu.memory_space<vmem>>, %arg3: memref<1x128xf32, #tpu.memory_space<vmem>>, %arg4: memref<64x128xbf16, #tpu.memory_space<vmem>>) attributes {dimension_semantics = [#tpu.dimension_semantics<parallel>], iteration_bounds = array<i64: 1>, scalar_prefetch = 0 : i64, scratch_operands = 0 : i64, tpu.core_type = #tpu.core_type<tc>, window_params = [{transform_indices = @transform_0, window_bounds = array<i64: 64, 16>}, {pipeline_mode = #tpu.pipeline_mode<synchronous>, transform_indices = @transform_1, window_bounds = array<i64: 16, 128>}, {pipeline_mode = #tpu.pipeline_mode<synchronous>, transform_indices = @transform_2, window_bounds = array<i64: 1, 128>}, {transform_indices = @transform_3, window_bounds = array<i64: 64, 128>}]} {
    %c0 = arith.constant 0 : index
    %c0_0 = arith.constant 0 : index
    %0 = vector.load %arg1[%c0, %c0_0] : memref<64x16xbf16, #tpu.memory_space<vmem>>, vector<64x16xbf16>
    %c0_1 = arith.constant 0 : index
    %c0_2 = arith.constant 0 : index
    %1 = vector.load %arg2[%c0_1, %c0_2] : memref<16x128xbf16, #tpu.memory_space<vmem>>, vector<16x128xbf16>
    %cst = arith.constant dense<0.000000e+00> : vector<64x128xf32>
    %2 = tpu.matmul %0, %1, %cst {dimension_numbers = #tpu.dot_dimension_numbers<[1], [0], [0], [1], [0, 0, 1, 1], [], []>} : vector<64x16xbf16>, vector<16x128xbf16>, vector<64x128xf32> -> vector<64x128xf32>
    %c0_3 = arith.constant 0 : index
    %c0_4 = arith.constant 0 : index
    %3 = vector.load %arg3[%c0_3, %c0_4] : memref<1x128xf32, #tpu.memory_space<vmem>>, vector<1x128xf32>
    %4 = vector.broadcast %3 : vector<1x128xf32> to vector<64x128xf32>
    %5 = arith.addf %2, %4 : vector<64x128xf32>
    %6 = arith.truncf %5 : vector<64x128xf32> to vector<64x128xbf16>
    %c0_5 = arith.constant 0 : index
    %c0_6 = arith.constant 0 : index
    %7 = vector.load %arg4[%c0_5, %c0_6] : memref<64x128xbf16, #tpu.memory_space<vmem>>, vector<64x128xbf16>
    tpu.vector_store %arg4[%c0_5, %c0_6], %6 {strides = array<i32>} : memref<64x128xbf16, #tpu.memory_space<vmem>>, vector<64x128xbf16>,
    return
  }
  func.func @transform_0(%arg0: i32) -> (i32, i32) {
    %c0_i32 = arith.constant 0 : i32
    %c0_i32_0 = arith.constant 0 : i32
    return %arg0, %c0_i32 : i32, i32
  }
  func.func @transform_1(%arg0: i32) -> (i32, i32) {
    %c0_i32 = arith.constant 0 : i32
    %c0_i32_0 = arith.constant 0 : i32
    %c0_i32_1 = arith.constant 0 : i32
    return %c0_i32, %c0_i32_0 : i32, i32
  }
  func.func @transform_2(%arg0: i32) -> (i32, i32) {
    %c0_i32 = arith.constant 0 : i32
    %c0_i32_0 = arith.constant 0 : i32
    %c0_i32_1 = arith.constant 0 : i32
    return %c0_i32, %c0_i32_0 : i32, i32
  }
  func.func @transform_3(%arg0: i32) -> (i32, i32) {
    %c0_i32 = arith.constant 0 : i32
    %c0_i32_0 = arith.constant 0 : i32
    return %arg0, %c0_i32 : i32, i32
  }
}

module attributes {stable_mosaic.version = 11 : i64} {
  func.func @_hop_linear_kernel(%arg0: i32, %arg1: memref<64x128xbf16, #tpu.memory_space<vmem>>, %arg2: memref<128x128xbf16, #tpu.memory_space<vmem>>, %arg3: memref<1x128xf32, #tpu.memory_space<vmem>>, %arg4: memref<64x128xbf16, #tpu.memory_space<vmem>>) attributes {dimension_semantics = [#tpu.dimension_semantics<parallel>], iteration_bounds = array<i64: 1>, scalar_prefetch = 0 : i64, scratch_operands = 0 : i64, tpu.core_type = #tpu.core_type<tc>, window_params = [{transform_indices = @transform_0, window_bounds = array<i64: 64, 128>}, {pipeline_mode = #tpu.pipeline_mode<synchronous>, transform_indices = @transform_1, window_bounds = array<i64: 128, 128>}, {pipeline_mode = #tpu.pipeline_mode<synchronous>, transform_indices = @transform_2, window_bounds = array<i64: 1, 128>}, {transform_indices = @transform_3, window_bounds = array<i64: 64, 128>}]} {
    %c0 = arith.constant 0 : index
    %c0_0 = arith.constant 0 : index
    %0 = vector.load %arg1[%c0, %c0_0] : memref<64x128xbf16, #tpu.memory_space<vmem>>, vector<64x128xbf16>
    %c0_1 = arith.constant 0 : index
    %c0_2 = arith.constant 0 : index
    %1 = vector.load %arg2[%c0_1, %c0_2] : memref<128x128xbf16, #tpu.memory_space<vmem>>, vector<128x128xbf16>
    %cst = arith.constant dense<0.000000e+00> : vector<64x128xf32>
    %2 = tpu.matmul %0, %1, %cst {dimension_numbers = #tpu.dot_dimension_numbers<[1], [0], [0], [1], [0, 0, 1, 1], [], []>} : vector<64x128xbf16>, vector<128x128xbf16>, vector<64x128xf32> -> vector<64x128xf32>
    %c0_3 = arith.constant 0 : index
    %c0_4 = arith.constant 0 : index
    %3 = vector.load %arg3[%c0_3, %c0_4] : memref<1x128xf32, #tpu.memory_space<vmem>>, vector<1x128xf32>
    %4 = vector.broadcast %3 : vector<1x128xf32> to vector<64x128xf32>
    %5 = arith.addf %2, %4 : vector<64x128xf32>
    %6 = arith.truncf %5 : vector<64x128xf32> to vector<64x128xbf16>
    %c0_5 = arith.constant 0 : index
    %c0_6 = arith.constant 0 : index
    %7 = vector.load %arg4[%c0_5, %c0_6] : memref<64x128xbf16, #tpu.memory_space<vmem>>, vector<64x128xbf16>
    tpu.vector_store %arg4[%c0_5, %c0_6], %6 {strides = array<i32>} : memref<64x128xbf16, #tpu.memory_space<vmem>>, vector<64x128xbf16>,
    return
  }
  func.func @transform_0(%arg0: i32) -> (i32, i32) {
    %c0_i32 = arith.constant 0 : i32
    %c0_i32_0 = arith.constant 0 : i32
    return %arg0, %c0_i32 : i32, i32
  }
  func.func @transform_1(%arg0: i32) -> (i32, i32) {
    %c0_i32 = arith.constant 0 : i32
    %c0_i32_0 = arith.constant 0 : i32
    %c0_i32_1 = arith.constant 0 : i32
    return %c0_i32, %c0_i32_0 : i32, i32
  }
  func.func @transform_2(%arg0: i32) -> (i32, i32) {
    %c0_i32 = arith.constant 0 : i32
    %c0_i32_0 = arith.constant 0 : i32
    %c0_i32_1 = arith.constant 0 : i32
    return %c0_i32, %c0_i32_0 : i32, i32
  }
  func.func @transform_3(%arg0: i32) -> (i32, i32) {
    %c0_i32 = arith.constant 0 : i32
    %c0_i32_0 = arith.constant 0 : i32
    return %arg0, %c0_i32 : i32, i32
  }
}

module attributes {stable_mosaic.version = 11 : i64} {
  func.func @_prop_kernel(%arg0: i32, %arg1: i32, %arg2: memref<64x64xbf16, #tpu.memory_space<vmem>>, %arg3: memref<64x128xbf16, #tpu.memory_space<vmem>>, %arg4: memref<64x128xbf16, #tpu.memory_space<vmem>>, %arg5: memref<64x128xbf16, #tpu.memory_space<vmem>>, %arg6: memref<64x128xf32, #tpu.memory_space<vmem>>) attributes {dimension_semantics = [#tpu.dimension_semantics<parallel>, #tpu.dimension_semantics<arbitrary>], iteration_bounds = array<i64: 1, 1>, scalar_prefetch = 0 : i64, scratch_operands = 1 : i64, tpu.core_type = #tpu.core_type<tc>, window_params = [{transform_indices = @transform_0, window_bounds = array<i64: 64, 64>}, {transform_indices = @transform_1, window_bounds = array<i64: 64, 128>}, {transform_indices = @transform_2, window_bounds = array<i64: 64, 128>}, {transform_indices = @transform_3, window_bounds = array<i64: 64, 128>}]} {
    %c0_i32 = arith.constant 0 : i32
    %0 = arith.cmpi eq, %arg1, %c0_i32 : i32
    %1 = arith.extui %0 : i1 to i32
    %c0_i32_0 = arith.constant 0 : i32
    %2 = arith.cmpi ne, %1, %c0_i32_0 : i32
    scf.if %2 {
      %cst_10 = arith.constant 0.000000e+00 : f32
      %12 = vector.broadcast %cst_10 : f32 to vector<64x128xf32>
      %c0_11 = arith.constant 0 : index
      %c0_12 = arith.constant 0 : index
      %13 = vector.load %arg6[%c0_11, %c0_12] : memref<64x128xf32, #tpu.memory_space<vmem>>, vector<64x128xf32>
      tpu.vector_store %arg6[%c0_11, %c0_12], %12 {strides = array<i32>} : memref<64x128xf32, #tpu.memory_space<vmem>>, vector<64x128xf32>,
    } else {
    }
    %c0 = arith.constant 0 : index
    %c0_1 = arith.constant 0 : index
    %3 = vector.load %arg6[%c0, %c0_1] : memref<64x128xf32, #tpu.memory_space<vmem>>, vector<64x128xf32>
    %c0_2 = arith.constant 0 : index
    %c0_3 = arith.constant 0 : index
    %4 = vector.load %arg2[%c0_2, %c0_3] : memref<64x64xbf16, #tpu.memory_space<vmem>>, vector<64x64xbf16>
    %c0_4 = arith.constant 0 : index
    %c0_5 = arith.constant 0 : index
    %5 = vector.load %arg3[%c0_4, %c0_5] : memref<64x128xbf16, #tpu.memory_space<vmem>>, vector<64x128xbf16>
    %cst = arith.constant dense<0.000000e+00> : vector<64x128xf32>
    %6 = tpu.matmul %4, %5, %cst {dimension_numbers = #tpu.dot_dimension_numbers<[1], [0], [0], [1], [0, 0, 1, 1], [], []>} : vector<64x64xbf16>, vector<64x128xbf16>, vector<64x128xf32> -> vector<64x128xf32>
    %7 = arith.addf %3, %6 : vector<64x128xf32>
    %c0_6 = arith.constant 0 : index
    %c0_7 = arith.constant 0 : index
    %8 = vector.load %arg6[%c0_6, %c0_7] : memref<64x128xf32, #tpu.memory_space<vmem>>, vector<64x128xf32>
    tpu.vector_store %arg6[%c0_6, %c0_7], %7 {strides = array<i32>} : memref<64x128xf32, #tpu.memory_space<vmem>>, vector<64x128xf32>,
    %c0_i32_8 = arith.constant 0 : i32
    %9 = arith.cmpi eq, %arg1, %c0_i32_8 : i32
    %10 = arith.extui %9 : i1 to i32
    %c0_i32_9 = arith.constant 0 : i32
    %11 = arith.cmpi ne, %10, %c0_i32_9 : i32
    scf.if %11 {
      %c0_10 = arith.constant 0 : index
      %c0_11 = arith.constant 0 : index
      %12 = vector.load %arg4[%c0_10, %c0_11] : memref<64x128xbf16, #tpu.memory_space<vmem>>, vector<64x128xbf16>
      %13 = arith.extf %12 : vector<64x128xbf16> to vector<64x128xf32>
      %14 = tpu.iota {dimensions = array<i32: 1>} : vector<1x128xi32>
      %c8_i32 = arith.constant 8 : i32
      %15 = vector.broadcast %c8_i32 : i32 to vector<1x128xi32>
      %16 = arith.cmpi sge, %14, %15 : vector<1x128xi32>
      %c0_12 = arith.constant 0 : index
      %c0_13 = arith.constant 0 : index
      %17 = vector.load %arg6[%c0_12, %c0_13] : memref<64x128xf32, #tpu.memory_space<vmem>>, vector<64x128xf32>
      %18 = vector.shape_cast %16 : vector<1x128xi1> to vector<1x128xi1>
      %19 = vector.broadcast %18 : vector<1x128xi1> to vector<64x128xi1>
      %20 = arith.select %19, %17, %13 : vector<64x128xi1>, vector<64x128xf32>
      %21 = arith.truncf %20 : vector<64x128xf32> to vector<64x128xbf16>
      %c0_14 = arith.constant 0 : index
      %c0_15 = arith.constant 0 : index
      %22 = vector.load %arg5[%c0_14, %c0_15] : memref<64x128xbf16, #tpu.memory_space<vmem>>, vector<64x128xbf16>
      tpu.vector_store %arg5[%c0_14, %c0_15], %21 {strides = array<i32>} : memref<64x128xbf16, #tpu.memory_space<vmem>>, vector<64x128xbf16>,
    } else {
    }
    return
  }
  func.func @transform_0(%arg0: i32, %arg1: i32) -> (i32, i32) {
    %c0_i32 = arith.constant 0 : i32
    return %arg0, %arg1 : i32, i32
  }
  func.func @transform_1(%arg0: i32, %arg1: i32) -> (i32, i32) {
    %c0_i32 = arith.constant 0 : i32
    %c0_i32_0 = arith.constant 0 : i32
    return %arg1, %c0_i32 : i32, i32
  }
  func.func @transform_2(%arg0: i32, %arg1: i32) -> (i32, i32) {
    %c0_i32 = arith.constant 0 : i32
    %c0_i32_0 = arith.constant 0 : i32
    return %arg0, %c0_i32 : i32, i32
  }
  func.func @transform_3(%arg0: i32, %arg1: i32) -> (i32, i32) {
    %c0_i32 = arith.constant 0 : i32
    %c0_i32_0 = arith.constant 0 : i32
    return %arg0, %c0_i32 : i32, i32
  }
}

module attributes {stable_mosaic.version = 11 : i64} {
  func.func @_prop_final_kernel(%arg0: i32, %arg1: i32, %arg2: memref<64x64xbf16, #tpu.memory_space<vmem>>, %arg3: memref<64x128xbf16, #tpu.memory_space<vmem>>, %arg4: memref<64x128xbf16, #tpu.memory_space<vmem>>, %arg5: memref<128x128xbf16, #tpu.memory_space<vmem>>, %arg6: memref<1x128xf32, #tpu.memory_space<vmem>>, %arg7: memref<64x128xf32, #tpu.memory_space<vmem>>, %arg8: memref<64x128xf32, #tpu.memory_space<vmem>>) attributes {dimension_semantics = [#tpu.dimension_semantics<parallel>, #tpu.dimension_semantics<arbitrary>], iteration_bounds = array<i64: 1, 1>, scalar_prefetch = 0 : i64, scratch_operands = 1 : i64, tpu.core_type = #tpu.core_type<tc>, window_params = [{transform_indices = @transform_0, window_bounds = array<i64: 64, 64>}, {transform_indices = @transform_1, window_bounds = array<i64: 64, 128>}, {transform_indices = @transform_2, window_bounds = array<i64: 64, 128>}, {pipeline_mode = #tpu.pipeline_mode<synchronous>, transform_indices = @transform_3, window_bounds = array<i64: 128, 128>}, {pipeline_mode = #tpu.pipeline_mode<synchronous>, transform_indices = @transform_4, window_bounds = array<i64: 1, 128>}, {transform_indices = @transform_5, window_bounds = array<i64: 64, 128>}]} {
    %c0_i32 = arith.constant 0 : i32
    %0 = arith.cmpi eq, %arg1, %c0_i32 : i32
    %1 = arith.extui %0 : i1 to i32
    %c0_i32_0 = arith.constant 0 : i32
    %2 = arith.cmpi ne, %1, %c0_i32_0 : i32
    scf.if %2 {
      %cst_10 = arith.constant 0.000000e+00 : f32
      %12 = vector.broadcast %cst_10 : f32 to vector<64x128xf32>
      %c0_11 = arith.constant 0 : index
      %c0_12 = arith.constant 0 : index
      %13 = vector.load %arg8[%c0_11, %c0_12] : memref<64x128xf32, #tpu.memory_space<vmem>>, vector<64x128xf32>
      tpu.vector_store %arg8[%c0_11, %c0_12], %12 {strides = array<i32>} : memref<64x128xf32, #tpu.memory_space<vmem>>, vector<64x128xf32>,
    } else {
    }
    %c0 = arith.constant 0 : index
    %c0_1 = arith.constant 0 : index
    %3 = vector.load %arg8[%c0, %c0_1] : memref<64x128xf32, #tpu.memory_space<vmem>>, vector<64x128xf32>
    %c0_2 = arith.constant 0 : index
    %c0_3 = arith.constant 0 : index
    %4 = vector.load %arg2[%c0_2, %c0_3] : memref<64x64xbf16, #tpu.memory_space<vmem>>, vector<64x64xbf16>
    %c0_4 = arith.constant 0 : index
    %c0_5 = arith.constant 0 : index
    %5 = vector.load %arg3[%c0_4, %c0_5] : memref<64x128xbf16, #tpu.memory_space<vmem>>, vector<64x128xbf16>
    %cst = arith.constant dense<0.000000e+00> : vector<64x128xf32>
    %6 = tpu.matmul %4, %5, %cst {dimension_numbers = #tpu.dot_dimension_numbers<[1], [0], [0], [1], [0, 0, 1, 1], [], []>} : vector<64x64xbf16>, vector<64x128xbf16>, vector<64x128xf32> -> vector<64x128xf32>
    %7 = arith.addf %3, %6 : vector<64x128xf32>
    %c0_6 = arith.constant 0 : index
    %c0_7 = arith.constant 0 : index
    %8 = vector.load %arg8[%c0_6, %c0_7] : memref<64x128xf32, #tpu.memory_space<vmem>>, vector<64x128xf32>
    tpu.vector_store %arg8[%c0_6, %c0_7], %7 {strides = array<i32>} : memref<64x128xf32, #tpu.memory_space<vmem>>, vector<64x128xf32>,
    %c0_i32_8 = arith.constant 0 : i32
    %9 = arith.cmpi eq, %arg1, %c0_i32_8 : i32
    %10 = arith.extui %9 : i1 to i32
    %c0_i32_9 = arith.constant 0 : i32
    %11 = arith.cmpi ne, %10, %c0_i32_9 : i32
    scf.if %11 {
      %c0_10 = arith.constant 0 : index
      %c0_11 = arith.constant 0 : index
      %12 = vector.load %arg4[%c0_10, %c0_11] : memref<64x128xbf16, #tpu.memory_space<vmem>>, vector<64x128xbf16>
      %13 = arith.extf %12 : vector<64x128xbf16> to vector<64x128xf32>
      %14 = tpu.iota {dimensions = array<i32: 1>} : vector<1x128xi32>
      %c16_i32 = arith.constant 16 : i32
      %15 = vector.broadcast %c16_i32 : i32 to vector<1x128xi32>
      %16 = arith.cmpi sge, %14, %15 : vector<1x128xi32>
      %c0_12 = arith.constant 0 : index
      %c0_13 = arith.constant 0 : index
      %17 = vector.load %arg8[%c0_12, %c0_13] : memref<64x128xf32, #tpu.memory_space<vmem>>, vector<64x128xf32>
      %18 = vector.shape_cast %16 : vector<1x128xi1> to vector<1x128xi1>
      %19 = vector.broadcast %18 : vector<1x128xi1> to vector<64x128xi1>
      %20 = arith.select %19, %17, %13 : vector<64x128xi1>, vector<64x128xf32>
      %21 = arith.truncf %20 : vector<64x128xf32> to vector<64x128xbf16>
      %c0_14 = arith.constant 0 : index
      %c0_15 = arith.constant 0 : index
      %22 = vector.load %arg5[%c0_14, %c0_15] : memref<128x128xbf16, #tpu.memory_space<vmem>>, vector<128x128xbf16>
      %cst_16 = arith.constant dense<0.000000e+00> : vector<64x128xf32>
      %23 = tpu.matmul %21, %22, %cst_16 {dimension_numbers = #tpu.dot_dimension_numbers<[1], [0], [0], [1], [0, 0, 1, 1], [], []>} : vector<64x128xbf16>, vector<128x128xbf16>, vector<64x128xf32> -> vector<64x128xf32>
      %c0_17 = arith.constant 0 : index
      %c0_18 = arith.constant 0 : index
      %24 = vector.load %arg6[%c0_17, %c0_18] : memref<1x128xf32, #tpu.memory_space<vmem>>, vector<1x128xf32>
      %25 = vector.broadcast %24 : vector<1x128xf32> to vector<64x128xf32>
      %26 = arith.addf %23, %25 : vector<64x128xf32>
      %c0_19 = arith.constant 0 : index
      %c0_20 = arith.constant 0 : index
      %27 = vector.load %arg7[%c0_19, %c0_20] : memref<64x128xf32, #tpu.memory_space<vmem>>, vector<64x128xf32>
      tpu.vector_store %arg7[%c0_19, %c0_20], %26 {strides = array<i32>} : memref<64x128xf32, #tpu.memory_space<vmem>>, vector<64x128xf32>,
    } else {
    }
    return
  }
  func.func @transform_0(%arg0: i32, %arg1: i32) -> (i32, i32) {
    %c0_i32 = arith.constant 0 : i32
    return %arg0, %arg1 : i32, i32
  }
  func.func @transform_1(%arg0: i32, %arg1: i32) -> (i32, i32) {
    %c0_i32 = arith.constant 0 : i32
    %c0_i32_0 = arith.constant 0 : i32
    return %arg1, %c0_i32 : i32, i32
  }
  func.func @transform_2(%arg0: i32, %arg1: i32) -> (i32, i32) {
    %c0_i32 = arith.constant 0 : i32
    %c0_i32_0 = arith.constant 0 : i32
    return %arg0, %c0_i32 : i32, i32
  }
  func.func @transform_3(%arg0: i32, %arg1: i32) -> (i32, i32) {
    %c0_i32 = arith.constant 0 : i32
    %c0_i32_0 = arith.constant 0 : i32
    %c0_i32_1 = arith.constant 0 : i32
    return %c0_i32, %c0_i32_0 : i32, i32
  }
  func.func @transform_4(%arg0: i32, %arg1: i32) -> (i32, i32) {
    %c0_i32 = arith.constant 0 : i32
    %c0_i32_0 = arith.constant 0 : i32
    %c0_i32_1 = arith.constant 0 : i32
    return %c0_i32, %c0_i32_0 : i32, i32
  }
  func.func @transform_5(%arg0: i32, %arg1: i32) -> (i32, i32) {
    %c0_i32 = arith.constant 0 : i32
    %c0_i32_0 = arith.constant 0 : i32
    return %arg0, %c0_i32 : i32, i32
  }
}

</mosaic_0001>

<llo_original>
// kernel: mixhop_forward.10
$region0: #{mixhop_forward.10}
  #allocation0 [shape = 'u32[]', space=smem, size = 0x4, offset = 0x4, fixed_abs, tag = 'smem constant byte address 0x4 - core index']
  #allocation1 [shape = 'u32[144,128]{1,0:T(1,128)}', space=vmem, size = 0x12000, scoped, tag = 'internal scratch']
  #allocation2 [shape = 'f32[64,128]{1,0:T(8,128)}', space=vmem, size = 0x8000, scoped, tag = 'scratch operand']
  %s0 = inlined_call_operand.vmem [shape: bf16[64,64], index: 0, kind: input, shape index: {}]
  %s1 = inlined_call_operand.vmem [shape: bf16[64,128], index: 1, kind: input, shape index: {}, may-alias: {1,2}]
  %s2 = inlined_call_operand.vmem [shape: bf16[64,128], index: 2, kind: input, shape index: {}, may-alias: {1,2}]
  %s3 = inlined_call_operand.vmem [shape: bf16[64,128], index: 3, kind: output, shape index: {}]
  %s4 = sld [smem:[#allocation0]]
  $region30: #{mixhop_forward.10} parent=0
    _
  %s6 = ssub.s32 1, %s4
  %s7 = scalar_select 0, %s6, %s4
  // Predicated region
  $region2: #{mixhop_forward.10} parent=0 // pred_check
    _
  $region3: #{mixhop_forward.10} parent=0 // pred_check_branch
    %9 = sbr.rel (0) target = $region5
  $region4: #{mixhop_forward.10} parent=0 // pred_region
    _
  $region5: #{mixhop_forward.10} parent=0 // pred_fallthru
    _
  // Predicated region
  $region6: #{mixhop_forward.10} parent=0 // pred_check
    _
  $region7: #{mixhop_forward.10} parent=0 // pred_check_branch
    %11 = sbr.rel (0) target = $region9
  $region8: #{mixhop_forward.10} parent=0 // pred_region
    _
  $region9: #{mixhop_forward.10} parent=0 // pred_fallthru
    _
  // Predicated region
  $region10: #{mixhop_forward.10} parent=0 // pred_check
    _
  $region11: #{mixhop_forward.10} parent=0 // pred_check_branch
    %13 = sbr.rel (0) target = $region13
  $region12: #{mixhop_forward.10} parent=0 // pred_region
    _
  $region13: #{mixhop_forward.10} parent=0 // pred_fallthru
    _
  %p15 = scmp.eq.s32.totalorder 0, 0
  // Predicated region
  $region14: #{mixhop_forward.10} parent=0 // pred_check
    %p16 = pneg %p15
  $region15: #{mixhop_forward.10} parent=0 // pred_check_branch
    %18 = sbr.rel (%p16) target = $region17
  $region16: #{mixhop_forward.10} parent=0 // pred_region
    %19 = vst [vmem:[#allocation2] sm:$0xff] 0.0
    %20 = vst [vmem:[#allocation2 + $0x8] sm:$0xff] 0.0
    %21 = vst [vmem:[#allocation2 + $0x10] sm:$0xff] 0.0
    %22 = vst [vmem:[#allocation2 + $0x18] sm:$0xff] 0.0
    %23 = vst [vmem:[#allocation2 + $0x20] sm:$0xff] 0.0
    %24 = vst [vmem:[#allocation2 + $0x28] sm:$0xff] 0.0
    %25 = vst [vmem:[#allocation2 + $0x30] sm:$0xff] 0.0
    %26 = vst [vmem:[#allocation2 + $0x38] sm:$0xff] 0.0
  $region17: #{mixhop_forward.10} parent=0 // pred_fallthru
    _
  %v27 = vld [vmem:[#allocation2] sm:$0xff]
  %v28 = vld [vmem:[#allocation2 + $0x8] sm:$0xff]
  %v29 = vld [vmem:[#allocation2 + $0x10] sm:$0xff]
  %v30 = vld [vmem:[#allocation2 + $0x18] sm:$0xff]
  %v31 = vld [vmem:[#allocation2 + $0x20] sm:$0xff]
  %v32 = vld [vmem:[#allocation2 + $0x28] sm:$0xff]
  %v33 = vld [vmem:[#allocation2 + $0x30] sm:$0xff]
  %v34 = vld [vmem:[#allocation2 + $0x38] sm:$0xff]
  %v35 = vld [vmem:[%s0] sm:$0xf]
  %v36 = vld [vmem:[%s0 + $0x4] sm:$0xf]
  %v37 = vld [vmem:[%s0 + $0x8] sm:$0xf]
  %v38 = vld [vmem:[%s0 + $0xc] sm:$0xf]
  %v39 = vld [vmem:[%s0 + $0x10] sm:$0xf]
  %v40 = vld [vmem:[%s0 + $0x14] sm:$0xf]
  %v41 = vld [vmem:[%s0 + $0x18] sm:$0xf]
  %v42 = vld [vmem:[%s0 + $0x1c] sm:$0xf]
  %v43 = vld [vmem:[%s1] sm:$0xf]
  %v44 = vld [vmem:[%s1 + $0x4] sm:$0xf]
  %v45 = vld [vmem:[%s1 + $0x8] sm:$0xf]
  %v46 = vld [vmem:[%s1 + $0xc] sm:$0xf]
  %v47 = vld [vmem:[%s1 + $0x10] sm:$0xf]
  %v48 = vld [vmem:[%s1 + $0x14] sm:$0xf]
  %v49 = vld [vmem:[%s1 + $0x18] sm:$0xf]
  %v50 = vld [vmem:[%s1 + $0x1c] sm:$0xf]
  %v59 = vunpack.c.l.b16 %v35
  %v60 = vunpack.c.l.b16 %v36
  %v61 = vunpack.c.l.b16 %v37
  %v62 = vunpack.c.l.b16 %v38
  %v63 = vunpack.c.l.b16 %v39
  %v64 = vunpack.c.l.b16 %v40
  %v65 = vunpack.c.l.b16 %v41
  %v66 = vunpack.c.l.b16 %v42
  %v67 = vpack.c.b16 %v60, %v59
  %v68 = vpack.c.b16 %v62, %v61
  %v69 = vpack.c.b16 %v64, %v63
  %v70 = vpack.c.b16 %v66, %v65
  %v79 = vunpack.c.l.b16 %v43
  %v80 = vunpack.c.l.b16 %v44
  %v81 = vunpack.c.l.b16 %v45
  %v82 = vunpack.c.l.b16 %v46
  %v83 = vunpack.c.l.b16 %v47
  %v84 = vunpack.c.l.b16 %v48
  %v85 = vunpack.c.l.b16 %v49
  %v86 = vunpack.c.l.b16 %v50
  %v87 = vpack.c.b16 %v80, %v79
  %v88 = vpack.c.b16 %v82, %v81
  %v89 = vpack.c.b16 %v84, %v83
  %v90 = vpack.c.b16 %v86, %v85
  %vm95 = vcmask 523264
  %v97 = vsel %vm95, %v67, 0
  %v100 = vsel %vm95, %v68, 0
  %v103 = vsel %vm95, %v69, 0
  %v106 = vsel %vm95, %v70, 0
  %108 = vmatprep.subr.bf16.mxu0 0
  %109 = vmatpush1.bf16.msra.mxu0 %v87
  %110 = vmatprep.subr.bf16.mxu0 0
  %111 = vmatpush1.bf16.msra.mxu0 %v88
  %112 = vmatprep.subr.bf16.mxu0 0
  %113 = vmatpush1.bf16.msra.mxu0 %v89
  %114 = vmatprep.subr.bf16.mxu0 0
  %115 = vmatpush1.bf16.msra.mxu0 %v90
  %116 = vmatprep.subr.bf16.mxu0 0
  %117 = vmatpush1.bf16.msra.mxu0 0
  %118 = vmatprep.subr.bf16.mxu0 0
  %119 = vmatpush1.bf16.msra.mxu0 0
  %120 = vmatprep.subr.bf16.mxu0 0
  %121 = vmatpush1.bf16.msra.mxu0 0
  %122 = vmatprep.subr.bf16.mxu0 0
  %123 = vmatpush1.bf16.msra.mxu0 0
  %124 = vmatprep.subr.bf16.mxu0 0
  %125 = vmatpush1.bf16.msra.mxu0 0
  %126 = vmatprep.subr.bf16.mxu0 0
  %127 = vmatpush1.bf16.msra.mxu0 0
  %128 = vmatprep.subr.bf16.mxu0 0
  %129 = vmatpush1.bf16.msra.mxu0 0
  %130 = vmatprep.subr.bf16.mxu0 0
  %131 = vmatpush1.bf16.msra.mxu0 0
  %132 = vmatprep.subr.bf16.mxu0 0
  %133 = vmatpush1.bf16.msra.mxu0 0
  %134 = vmatprep.subr.bf16.mxu0 0
  %135 = vmatpush1.bf16.msra.mxu0 0
  %136 = vmatprep.subr.bf16.mxu0 0
  %137 = vmatpush1.bf16.msra.mxu0 0
  %138 = vmatprep.subr.bf16.mxu0 0
  %139 = vmatpush1.bf16.msra.mxu0 0
  %140 = vmatprep.mubr.bf16.mxu0 0
  %141 = vmatmul.mubr.bf16.gmra.mrb[0].mxu0 %v97
  %v142 = vpop.f32.mrb[0].mxu0
  %v143 = vadd.f32 0.0, %v142
  %v144 = vpop.f32.mrb[0].mxu0
  %v145 = vpop.f32.mrb[0].mxu0
  %v146 = vadd.f32 0.0, %v145
  %v147 = vpop.f32.mrb[0].mxu0
  %148 = vmatprep.mubr.bf16.mxu0 0
  %149 = vmatmul.mubr.bf16.gmra.mrb[0].mxu0 %v100
  %v150 = vpop.f32.mrb[0].mxu0
  %v151 = vadd.f32 0.0, %v150
  %v152 = vpop.f32.mrb[0].mxu0
  %v153 = vpop.f32.mrb[0].mxu0
  %v154 = vadd.f32 0.0, %v153
  %v155 = vpop.f32.mrb[0].mxu0
  %156 = vmatprep.mubr.bf16.mxu0 0
  %157 = vmatmul.mubr.bf16.gmra.mrb[0].mxu0 %v103
  %v158 = vpop.f32.mrb[0].mxu0
  %v159 = vadd.f32 0.0, %v158
  %v160 = vpop.f32.mrb[0].mxu0
  %v161 = vpop.f32.mrb[0].mxu0
  %v162 = vadd.f32 0.0, %v161
  %v163 = vpop.f32.mrb[0].mxu0
  %164 = vmatprep.mubr.bf16.mxu0 0
  %165 = vmatmul.mubr.bf16.gmra.mrb[0].mxu0 %v106
  %v166 = vpop.f32.mrb[0].mxu0
  %v167 = vadd.f32 0.0, %v166
  %v168 = vpop.f32.mrb[0].mxu0
  %v169 = vpop.f32.mrb[0].mxu0
  %v170 = vadd.f32 0.0, %v169
  %v171 = vpop.f32.mrb[0].mxu0
  %172 = vdwg.mxu0
  %v173 = vadd.f32 %v27, %v143
  %v174 = vadd.f32 %v28, %v146
  %v175 = vadd.f32 %v29, %v151
  %v176 = vadd.f32 %v30, %v154
  %v177 = vadd.f32 %v31, %v159
  %v178 = vadd.f32 %v32, %v162
  %v179 = vadd.f32 %v33, %v167
  %v180 = vadd.f32 %v34, %v170
  %181 = vst [vmem:[#allocation2] sm:$0xff] %v173
  %182 = vst [vmem:[#allocation2 + $0x8] sm:$0xff] %v174
  %183 = vst [vmem:[#allocation2 + $0x10] sm:$0xff] %v175
  %184 = vst [vmem:[#allocation2 + $0x18] sm:$0xff] %v176
  %185 = vst [vmem:[#allocation2 + $0x20] sm:$0xff] %v177
  %186 = vst [vmem:[#allocation2 + $0x28] sm:$0xff] %v178
  %187 = vst [vmem:[#allocation2 + $0x30] sm:$0xff] %v179
  %188 = vst [vmem:[#allocation2 + $0x38] sm:$0xff] %v180
  // Predicated region
  $region18: #{mixhop_forward.10} parent=0 // pred_check
    %p189 = pneg %p15
  $region19: #{mixhop_forward.10} parent=0 // pred_check_branch
    %191 = sbr.rel (%p189) target = $region21
  $region20: #{mixhop_forward.10} parent=0 // pred_region
    %v192 = vld [vmem:[%s2] sm:$0xf]
    %v193 = vld [vmem:[%s2 + $0x4] sm:$0xf]
    %v194 = vld [vmem:[%s2 + $0x8] sm:$0xf]
    %v195 = vld [vmem:[%s2 + $0xc] sm:$0xf]
    %v196 = vld [vmem:[%s2 + $0x10] sm:$0xf]
    %v197 = vld [vmem:[%s2 + $0x14] sm:$0xf]
    %v198 = vld [vmem:[%s2 + $0x18] sm:$0xf]
    %v199 = vld [vmem:[%s2 + $0x1c] sm:$0xf]
    %v200 = vunpack.c.l.bf16 %v192
    %v201 = vunpack.c.l.bf16 %v193
    %v202 = vunpack.c.l.bf16 %v194
    %v203 = vunpack.c.l.bf16 %v195
    %v204 = vunpack.c.l.bf16 %v196
    %v205 = vunpack.c.l.bf16 %v197
    %v206 = vunpack.c.l.bf16 %v198
    %v207 = vunpack.c.l.bf16 %v199
    %v208 = vlaneseq
    %v209 = vand.u32 %v208, 127
    %vm210 = vcmp.ge.s32.totalorder %v209, 32
    %v211 = vld [vmem:[#allocation2] sm:$0xff]
    %v212 = vld [vmem:[#allocation2 + $0x8] sm:$0xff]
    %v213 = vld [vmem:[#allocation2 + $0x10] sm:$0xff]
    %v214 = vld [vmem:[#allocation2 + $0x18] sm:$0xff]
    %v215 = vld [vmem:[#allocation2 + $0x20] sm:$0xff]
    %v216 = vld [vmem:[#allocation2 + $0x28] sm:$0xff]
    %v217 = vld [vmem:[#allocation2 + $0x30] sm:$0xff]
    %v218 = vld [vmem:[#allocation2 + $0x38] sm:$0xff]
    %v219 = vsel %vm210, 1, 0
    %vm220 = vcmp.eq.s32.totalorder %v219, 1
    %v221 = vsel %vm220, %v211, %v200
    %v222 = vsel %vm220, %v212, %v201
    %v223 = vsel %vm220, %v213, %v202
    %v224 = vsel %vm220, %v214, %v203
    %v225 = vsel %vm220, %v215, %v204
    %v226 = vsel %vm220, %v216, %v205
    %v227 = vsel %vm220, %v217, %v206
    %v228 = vsel %vm220, %v218, %v207
    %v229 = vpack.c.bf16 %v222, %v221
    %v230 = vpack.c.bf16 %v224, %v223
    %v231 = vpack.c.bf16 %v226, %v225
    %v232 = vpack.c.bf16 %v228, %v227
    %v237 = vunpack.c.l.b16 %v229
    %v238 = vunpack.c.h.b16 %v229
    %v239 = vunpack.c.l.b16 %v230
    %v240 = vunpack.c.h.b16 %v230
    %v241 = vunpack.c.l.b16 %v231
    %v242 = vunpack.c.h.b16 %v231
    %v243 = vunpack.c.l.b16 %v232
    %v244 = vunpack.c.h.b16 %v232
    %v245 = vpack.c.b16 %v237, %v237
    %v246 = vpack.c.b16 %v238, %v238
    %v247 = vpack.c.b16 %v239, %v239
    %v248 = vpack.c.b16 %v240, %v240
    %v249 = vpack.c.b16 %v241, %v241
    %v250 = vpack.c.b16 %v242, %v242
    %v251 = vpack.c.b16 %v243, %v243
    %v252 = vpack.c.b16 %v244, %v244
    %261 = vst [vmem:[%s3] sm:$0xf] %v245
    %262 = vst [vmem:[%s3 + $0x4] sm:$0xf] %v246
    %263 = vst [vmem:[%s3 + $0x8] sm:$0xf] %v247
    %264 = vst [vmem:[%s3 + $0xc] sm:$0xf] %v248
    %265 = vst [vmem:[%s3 + $0x10] sm:$0xf] %v249
    %266 = vst [vmem:[%s3 + $0x14] sm:$0xf] %v250
    %267 = vst [vmem:[%s3 + $0x18] sm:$0xf] %v251
    %268 = vst [vmem:[%s3 + $0x1c] sm:$0xf] %v252
  $region21: #{mixhop_forward.10} parent=0 // pred_fallthru
    _
  // Predicated region
  $region22: #{mixhop_forward.10} parent=0 // pred_check
    _
  $region23: #{mixhop_forward.10} parent=0 // pred_check_branch
    %270 = sbr.rel (0) target = $region25
  $region24: #{mixhop_forward.10} parent=0 // pred_region
    _
  $region25: #{mixhop_forward.10} parent=0 // pred_fallthru
    _
  // Predicated region
  $region26: #{mixhop_forward.10} parent=0 // pred_check
    _
  $region27: #{mixhop_forward.10} parent=0 // pred_check_branch
    %272 = sbr.rel (0) target = $region29
  $region28: #{mixhop_forward.10} parent=0 // pred_region
    _
  $region29: #{mixhop_forward.10} parent=0 // pred_fallthru
    _

// kernel: mixhop_forward.9
$region0: #{mixhop_forward.9}
  #allocation0 [shape = 'u32[]', space=smem, size = 0x4, offset = 0x4, fixed_abs, tag = 'smem constant byte address 0x4 - core index']
  #allocation1 [shape = 'u32[144,128]{1,0:T(1,128)}', space=vmem, size = 0x12000, scoped, tag = 'internal scratch']
  %s0 = inlined_call_operand.vmem [shape: bf16[64,16], index: 0, kind: input, shape index: {}]
  %s1 = inlined_call_operand.vmem [shape: bf16[16,128], index: 1, kind: input, shape index: {}]
  %s2 = inlined_call_operand.vmem [shape: f32[1,128], index: 2, kind: input, shape index: {}]
  %s3 = inlined_call_operand.vmem [shape: bf16[64,128], index: 3, kind: output, shape index: {}]
  %s4 = sld [smem:[#allocation0]]
  $region22: #{mixhop_forward.9} parent=0
    _
  %s6 = ssub.s32 1, %s4
  %s7 = scalar_select 0, %s6, %s4
  // Predicated region
  $region2: #{mixhop_forward.9} parent=0 // pred_check
    _
  $region3: #{mixhop_forward.9} parent=0 // pred_check_branch
    %9 = sbr.rel (0) target = $region5
  $region4: #{mixhop_forward.9} parent=0 // pred_region
    _
  $region5: #{mixhop_forward.9} parent=0 // pred_fallthru
    _
  // Predicated region
  $region6: #{mixhop_forward.9} parent=0 // pred_check
    _
  $region7: #{mixhop_forward.9} parent=0 // pred_check_branch
    %11 = sbr.rel (0) target = $region9
  $region8: #{mixhop_forward.9} parent=0 // pred_region
    _
  $region9: #{mixhop_forward.9} parent=0 // pred_fallthru
    _
  // Predicated region
  $region10: #{mixhop_forward.9} parent=0 // pred_check
    _
  $region11: #{mixhop_forward.9} parent=0 // pred_check_branch
    %13 = sbr.rel (0) target = $region13
  $region12: #{mixhop_forward.9} parent=0 // pred_region
    _
  $region13: #{mixhop_forward.9} parent=0 // pred_fallthru
    _
  %v15 = vld [vmem:[%s0] sm:$0xf]
  %v16 = vld [vmem:[%s0 + $0x4] sm:$0xf]
  %v17 = vld [vmem:[%s0 + $0x8] sm:$0xf]
  %v18 = vld [vmem:[%s0 + $0xc] sm:$0xf]
  %v19 = vld [vmem:[%s0 + $0x10] sm:$0xf]
  %v20 = vld [vmem:[%s0 + $0x14] sm:$0xf]
  %v21 = vld [vmem:[%s0 + $0x18] sm:$0xf]
  %v22 = vld [vmem:[%s0 + $0x1c] sm:$0xf]
  %v23 = vld [vmem:[%s1] sm:$0xf]
  %v24 = vld [vmem:[%s1 + $0x4] sm:$0xf]
  %v25 = vld [vmem:[%s2] sm:$0x1]
  %v27 = vlaneseq
  %v28 = vshrl.u32 %v27, 7
  %v29 = vsub.s32 0, %v28
  %v30 = vrot.slane %v25, %v29
  %v40 = vunpack.c.l.b16 %v15
  %v41 = vunpack.c.l.b16 %v16
  %v42 = vunpack.c.l.b16 %v17
  %v43 = vunpack.c.l.b16 %v18
  %v44 = vunpack.c.l.b16 %v19
  %v45 = vunpack.c.l.b16 %v20
  %v46 = vunpack.c.l.b16 %v21
  %v47 = vunpack.c.l.b16 %v22
  %v48 = vpack.c.b16 %v41, %v40
  %v49 = vpack.c.b16 %v43, %v42
  %v50 = vpack.c.b16 %v45, %v44
  %v51 = vpack.c.b16 %v47, %v46
  %v54 = vunpack.c.l.b16 %v23
  %v55 = vunpack.c.l.b16 %v24
  %v56 = vpack.c.b16 %v55, %v54
  %vm58 = vcmask 130048
  %v60 = vsel %vm58, %v48, 0
  %v63 = vsel %vm58, %v49, 0
  %v66 = vsel %vm58, %v50, 0
  %v69 = vsel %vm58, %v51, 0
  %71 = vmatprep.subr.bf16.mxu0 0
  %72 = vmatpush1.bf16.msra.mxu0 %v56
  %73 = vmatprep.subr.bf16.mxu0 0
  %74 = vmatpush1.bf16.msra.mxu0 0
  %75 = vmatprep.subr.bf16.mxu0 0
  %76 = vmatpush1.bf16.msra.mxu0 0
  %77 = vmatprep.subr.bf16.mxu0 0
  %78 = vmatpush1.bf16.msra.mxu0 0
  %79 = vmatprep.subr.bf16.mxu0 0
  %80 = vmatpush1.bf16.msra.mxu0 0
  %81 = vmatprep.subr.bf16.mxu0 0
  %82 = vmatpush1.bf16.msra.mxu0 0
  %83 = vmatprep.subr.bf16.mxu0 0
  %84 = vmatpush1.bf16.msra.mxu0 0
  %85 = vmatprep.subr.bf16.mxu0 0
  %86 = vmatpush1.bf16.msra.mxu0 0
  %87 = vmatprep.subr.bf16.mxu0 0
  %88 = vmatpush1.bf16.msra.mxu0 0
  %89 = vmatprep.subr.bf16.mxu0 0
  %90 = vmatpush1.bf16.msra.mxu0 0
  %91 = vmatprep.subr.bf16.mxu0 0
  %92 = vmatpush1.bf16.msra.mxu0 0
  %93 = vmatprep.subr.bf16.mxu0 0
  %94 = vmatpush1.bf16.msra.mxu0 0
  %95 = vmatprep.subr.bf16.mxu0 0
  %96 = vmatpush1.bf16.msra.mxu0 0
  %97 = vmatprep.subr.bf16.mxu0 0
  %98 = vmatpush1.bf16.msra.mxu0 0
  %99 = vmatprep.subr.bf16.mxu0 0
  %100 = vmatpush1.bf16.msra.mxu0 0
  %101 = vmatprep.subr.bf16.mxu0 0
  %102 = vmatpush1.bf16.msra.mxu0 0
  %103 = vmatprep.mubr.bf16.mxu0 0
  %104 = vmatmul.mubr.bf16.gmra.mrb[0].mxu0 %v60
  %v105 = vpop.f32.mrb[0].mxu0
  %v106 = vadd.f32 %v30, %v105
  %v107 = vpop.f32.mrb[0].mxu0
  %v108 = vpop.f32.mrb[0].mxu0
  %v109 = vadd.f32 %v30, %v108
  %v110 = vpop.f32.mrb[0].mxu0
  %111 = vmatprep.mubr.bf16.mxu0 0
  %112 = vmatmul.mubr.bf16.gmra.mrb[0].mxu0 %v63
  %v113 = vpop.f32.mrb[0].mxu0
  %v114 = vadd.f32 %v30, %v113
  %v115 = vpop.f32.mrb[0].mxu0
  %v116 = vpop.f32.mrb[0].mxu0
  %v117 = vadd.f32 %v30, %v116
  %v118 = vpop.f32.mrb[0].mxu0
  %119 = vmatprep.mubr.bf16.mxu0 0
  %120 = vmatmul.mubr.bf16.gmra.mrb[0].mxu0 %v66
  %v121 = vpop.f32.mrb[0].mxu0
  %v122 = vadd.f32 %v30, %v121
  %v123 = vpop.f32.mrb[0].mxu0
  %v124 = vpop.f32.mrb[0].mxu0
  %v125 = vadd.f32 %v30, %v124
  %v126 = vpop.f32.mrb[0].mxu0
  %127 = vmatprep.mubr.bf16.mxu0 0
  %128 = vmatmul.mubr.bf16.gmra.mrb[0].mxu0 %v69
  %v129 = vpop.f32.mrb[0].mxu0
  %v130 = vadd.f32 %v30, %v129
  %v131 = vpop.f32.mrb[0].mxu0
  %v132 = vpop.f32.mrb[0].mxu0
  %v133 = vadd.f32 %v30, %v132
  %v134 = vpop.f32.mrb[0].mxu0
  %135 = vdwg.mxu0
  %v136 = vpack.c.bf16 %v109, %v106
  %v137 = vpack.c.bf16 %v117, %v114
  %v138 = vpack.c.bf16 %v125, %v122
  %v139 = vpack.c.bf16 %v133, %v130
  %v144 = vunpack.c.l.b16 %v136
  %v145 = vunpack.c.h.b16 %v136
  %v146 = vunpack.c.l.b16 %v137
  %v147 = vunpack.c.h.b16 %v137
  %v148 = vunpack.c.l.b16 %v138
  %v149 = vunpack.c.h.b16 %v138
  %v150 = vunpack.c.l.b16 %v139
  %v151 = vunpack.c.h.b16 %v139
  %v152 = vpack.c.b16 %v144, %v144
  %v153 = vpack.c.b16 %v145, %v145
  %v154 = vpack.c.b16 %v146, %v146
  %v155 = vpack.c.b16 %v147, %v147
  %v156 = vpack.c.b16 %v148, %v148
  %v157 = vpack.c.b16 %v149, %v149
  %v158 = vpack.c.b16 %v150, %v150
  %v159 = vpack.c.b16 %v151, %v151
  %168 = vst [vmem:[%s3] sm:$0xf] %v152
  %169 = vst [vmem:[%s3 + $0x4] sm:$0xf] %v153
  %170 = vst [vmem:[%s3 + $0x8] sm:$0xf] %v154
  %171 = vst [vmem:[%s3 + $0xc] sm:$0xf] %v155
  %172 = vst [vmem:[%s3 + $0x10] sm:$0xf] %v156
  %173 = vst [vmem:[%s3 + $0x14] sm:$0xf] %v157
  %174 = vst [vmem:[%s3 + $0x18] sm:$0xf] %v158
  %175 = vst [vmem:[%s3 + $0x1c] sm:$0xf] %v159
  // Predicated region
  $region14: #{mixhop_forward.9} parent=0 // pred_check
    _
  $region15: #{mixhop_forward.9} parent=0 // pred_check_branch
    %177 = sbr.rel (0) target = $region17
  $region16: #{mixhop_forward.9} parent=0 // pred_region
    _
  $region17: #{mixhop_forward.9} parent=0 // pred_fallthru
    _
  // Predicated region
  $region18: #{mixhop_forward.9} parent=0 // pred_check
    _
  $region19: #{mixhop_forward.9} parent=0 // pred_check_branch
    %179 = sbr.rel (0) target = $region21
  $region20: #{mixhop_forward.9} parent=0 // pred_region
    _
  $region21: #{mixhop_forward.9} parent=0 // pred_fallthru
    _

// kernel: mixhop_forward.11
$region0: #{mixhop_forward.11}
  #allocation0 [shape = 'u32[]', space=smem, size = 0x4, offset = 0x4, fixed_abs, tag = 'smem constant byte address 0x4 - core index']
  #allocation1 [shape = 'u32[144,128]{1,0:T(1,128)}', space=vmem, size = 0x12000, scoped, tag = 'internal scratch']
  #allocation2 [shape = 'f32[64,128]{1,0:T(8,128)}', space=vmem, size = 0x8000, scoped, tag = 'scratch operand']
  %s0 = inlined_call_operand.vmem [shape: bf16[64,64], index: 0, kind: input, shape index: {}]
  %s1 = inlined_call_operand.vmem [shape: bf16[64,128], index: 1, kind: input, shape index: {}, may-alias: {1,2}]
  %s2 = inlined_call_operand.vmem [shape: bf16[64,128], index: 2, kind: input, shape index: {}, may-alias: {1,2}]
  %s3 = inlined_call_operand.vmem [shape: f32[1,128], index: 3, kind: input, shape index: {}]
  %s4 = inlined_call_operand.vmem [shape: f32[1,128], index: 4, kind: input, shape index: {}]
  %s5 = inlined_call_operand.vmem [shape: bf16[64,128], index: 5, kind: output, shape index: {}]
  %s6 = sld [smem:[#allocation0]]
  $region38: #{mixhop_forward.11} parent=0
    _
  %s8 = ssub.s32 1, %s6
  %s9 = scalar_select 0, %s8, %s6
  // Predicated region
  $region2: #{mixhop_forward.11} parent=0 // pred_check
    _
  $region3: #{mixhop_forward.11} parent=0 // pred_check_branch
    %11 = sbr.rel (0) target = $region5
  $region4: #{mixhop_forward.11} parent=0 // pred_region
    _
  $region5: #{mixhop_forward.11} parent=0 // pred_fallthru
    _
  // Predicated region
  $region6: #{mixhop_forward.11} parent=0 // pred_check
    _
  $region7: #{mixhop_forward.11} parent=0 // pred_check_branch
    %13 = sbr.rel (0) target = $region9
  $region8: #{mixhop_forward.11} parent=0 // pred_region
    _
  $region9: #{mixhop_forward.11} parent=0 // pred_fallthru
    _
  // Predicated region
  $region10: #{mixhop_forward.11} parent=0 // pred_check
    _
  $region11: #{mixhop_forward.11} parent=0 // pred_check_branch
    %15 = sbr.rel (0) target = $region13
  $region12: #{mixhop_forward.11} parent=0 // pred_region
    _
  $region13: #{mixhop_forward.11} parent=0 // pred_fallthru
    _
  // Predicated region
  $region14: #{mixhop_forward.11} parent=0 // pred_check
    _
  $region15: #{mixhop_forward.11} parent=0 // pred_check_branch
    %17 = sbr.rel (0) target = $region17
  $region16: #{mixhop_forward.11} parent=0 // pred_region
    _
  $region17: #{mixhop_forward.11} parent=0 // pred_fallthru
    _
  // Predicated region
  $region18: #{mixhop_forward.11} parent=0 // pred_check
    _
  $region19: #{mixhop_forward.11} parent=0 // pred_check_branch
    %19 = sbr.rel (0) target = $region21
  $region20: #{mixhop_forward.11} parent=0 // pred_region
    _
  $region21: #{mixhop_forward.11} parent=0 // pred_fallthru
    _
  %p21 = scmp.eq.s32.totalorder 0, 0
  // Predicated region
  $region22: #{mixhop_forward.11} parent=0 // pred_check
    %p22 = pneg %p21
  $region23: #{mixhop_forward.11} parent=0 // pred_check_branch
    %24 = sbr.rel (%p22) target = $region25
  $region24: #{mixhop_forward.11} parent=0 // pred_region
    %25 = vst [vmem:[#allocation2] sm:$0xff] 0.0
    %26 = vst [vmem:[#allocation2 + $0x8] sm:$0xff] 0.0
    %27 = vst [vmem:[#allocation2 + $0x10] sm:$0xff] 0.0
    %28 = vst [vmem:[#allocation2 + $0x18] sm:$0xff] 0.0
    %29 = vst [vmem:[#allocation2 + $0x20] sm:$0xff] 0.0
    %30 = vst [vmem:[#allocation2 + $0x28] sm:$0xff] 0.0
    %31 = vst [vmem:[#allocation2 + $0x30] sm:$0xff] 0.0
    %32 = vst [vmem:[#allocation2 + $0x38] sm:$0xff] 0.0
  $region25: #{mixhop_forward.11} parent=0 // pred_fallthru
    _
  %v33 = vld [vmem:[#allocation2] sm:$0xff]
  %v34 = vld [vmem:[#allocation2 + $0x8] sm:$0xff]
  %v35 = vld [vmem:[#allocation2 + $0x10] sm:$0xff]
  %v36 = vld [vmem:[#allocation2 + $0x18] sm:$0xff]
  %v37 = vld [vmem:[#allocation2 + $0x20] sm:$0xff]
  %v38 = vld [vmem:[#allocation2 + $0x28] sm:$0xff]
  %v39 = vld [vmem:[#allocation2 + $0x30] sm:$0xff]
  %v40 = vld [vmem:[#allocation2 + $0x38] sm:$0xff]
  %v41 = vld [vmem:[%s0] sm:$0xf]
  %v42 = vld [vmem:[%s0 + $0x4] sm:$0xf]
  %v43 = vld [vmem:[%s0 + $0x8] sm:$0xf]
  %v44 = vld [vmem:[%s0 + $0xc] sm:$0xf]
  %v45 = vld [vmem:[%s0 + $0x10] sm:$0xf]
  %v46 = vld [vmem:[%s0 + $0x14] sm:$0xf]
  %v47 = vld [vmem:[%s0 + $0x18] sm:$0xf]
  %v48 = vld [vmem:[%s0 + $0x1c] sm:$0xf]
  %v49 = vld [vmem:[%s1] sm:$0xf]
  %v50 = vld [vmem:[%s1 + $0x4] sm:$0xf]
  %v51 = vld [vmem:[%s1 + $0x8] sm:$0xf]
  %v52 = vld [vmem:[%s1 + $0xc] sm:$0xf]
  %v53 = vld [vmem:[%s1 + $0x10] sm:$0xf]
  %v54 = vld [vmem:[%s1 + $0x14] sm:$0xf]
  %v55 = vld [vmem:[%s1 + $0x18] sm:$0xf]
  %v56 = vld [vmem:[%s1 + $0x1c] sm:$0xf]
  %v65 = vunpack.c.l.b16 %v41
  %v66 = vunpack.c.l.b16 %v42
  %v67 = vunpack.c.l.b16 %v43
  %v68 = vunpack.c.l.b16 %v44
  %v69 = vunpack.c.l.b16 %v45
  %v70 = vunpack.c.l.b16 %v46
  %v71 = vunpack.c.l.b16 %v47
  %v72 = vunpack.c.l.b16 %v48
  %v73 = vpack.c.b16 %v66, %v65
  %v74 = vpack.c.b16 %v68, %v67
  %v75 = vpack.c.b16 %v70, %v69
  %v76 = vpack.c.b16 %v72, %v71
  %v85 = vunpack.c.l.b16 %v49
  %v86 = vunpack.c.l.b16 %v50
  %v87 = vunpack.c.l.b16 %v51
  %v88 = vunpack.c.l.b16 %v52
  %v89 = vunpack.c.l.b16 %v53
  %v90 = vunpack.c.l.b16 %v54
  %v91 = vunpack.c.l.b16 %v55
  %v92 = vunpack.c.l.b16 %v56
  %v93 = vpack.c.b16 %v86, %v85
  %v94 = vpack.c.b16 %v88, %v87
  %v95 = vpack.c.b16 %v90, %v89
  %v96 = vpack.c.b16 %v92, %v91
  %vm101 = vcmask 523264
  %v103 = vsel %vm101, %v73, 0
  %v106 = vsel %vm101, %v74, 0
  %v109 = vsel %vm101, %v75, 0
  %v112 = vsel %vm101, %v76, 0
  %114 = vmatprep.subr.bf16.mxu0 0
  %115 = vmatpush1.bf16.msra.mxu0 %v93
  %116 = vmatprep.subr.bf16.mxu0 0
  %117 = vmatpush1.bf16.msra.mxu0 %v94
  %118 = vmatprep.subr.bf16.mxu0 0
  %119 = vmatpush1.bf16.msra.mxu0 %v95
  %120 = vmatprep.subr.bf16.mxu0 0
  %121 = vmatpush1.bf16.msra.mxu0 %v96
  %122 = vmatprep.subr.bf16.mxu0 0
  %123 = vmatpush1.bf16.msra.mxu0 0
  %124 = vmatprep.subr.bf16.mxu0 0
  %125 = vmatpush1.bf16.msra.mxu0 0
  %126 = vmatprep.subr.bf16.mxu0 0
  %127 = vmatpush1.bf16.msra.mxu0 0
  %128 = vmatprep.subr.bf16.mxu0 0
  %129 = vmatpush1.bf16.msra.mxu0 0
  %130 = vmatprep.subr.bf16.mxu0 0
  %131 = vmatpush1.bf16.msra.mxu0 0
  %132 = vmatprep.subr.bf16.mxu0 0
  %133 = vmatpush1.bf16.msra.mxu0 0
  %134 = vmatprep.subr.bf16.mxu0 0
  %135 = vmatpush1.bf16.msra.mxu0 0
  %136 = vmatprep.subr.bf16.mxu0 0
  %137 = vmatpush1.bf16.msra.mxu0 0
  %138 = vmatprep.subr.bf16.mxu0 0
  %139 = vmatpush1.bf16.msra.mxu0 0
  %140 = vmatprep.subr.bf16.mxu0 0
  %141 = vmatpush1.bf16.msra.mxu0 0
  %142 = vmatprep.subr.bf16.mxu0 0
  %143 = vmatpush1.bf16.msra.mxu0 0
  %144 = vmatprep.subr.bf16.mxu0 0
  %145 = vmatpush1.bf16.msra.mxu0 0
  %146 = vmatprep.mubr.bf16.mxu0 0
  %147 = vmatmul.mubr.bf16.gmra.mrb[0].mxu0 %v103
  %v148 = vpop.f32.mrb[0].mxu0
  %v149 = vadd.f32 0.0, %v148
  %v150 = vpop.f32.mrb[0].mxu0
  %v151 = vpop.f32.mrb[0].mxu0
  %v152 = vadd.f32 0.0, %v151
  %v153 = vpop.f32.mrb[0].mxu0
  %154 = vmatprep.mubr.bf16.mxu0 0
  %155 = vmatmul.mubr.bf16.gmra.mrb[0].mxu0 %v106
  %v156 = vpop.f32.mrb[0].mxu0
  %v157 = vadd.f32 0.0, %v156
  %v158 = vpop.f32.mrb[0].mxu0
  %v159 = vpop.f32.mrb[0].mxu0
  %v160 = vadd.f32 0.0, %v159
  %v161 = vpop.f32.mrb[0].mxu0
  %162 = vmatprep.mubr.bf16.mxu0 0
  %163 = vmatmul.mubr.bf16.gmra.mrb[0].mxu0 %v109
  %v164 = vpop.f32.mrb[0].mxu0
  %v165 = vadd.f32 0.0, %v164
  %v166 = vpop.f32.mrb[0].mxu0
  %v167 = vpop.f32.mrb[0].mxu0
  %v168 = vadd.f32 0.0, %v167
  %v169 = vpop.f32.mrb[0].mxu0
  %170 = vmatprep.mubr.bf16.mxu0 0
  %171 = vmatmul.mubr.bf16.gmra.mrb[0].mxu0 %v112
  %v172 = vpop.f32.mrb[0].mxu0
  %v173 = vadd.f32 0.0, %v172
  %v174 = vpop.f32.mrb[0].mxu0
  %v175 = vpop.f32.mrb[0].mxu0
  %v176 = vadd.f32 0.0, %v175
  %v177 = vpop.f32.mrb[0].mxu0
  %178 = vdwg.mxu0
  %v179 = vadd.f32 %v33, %v149
  %v180 = vadd.f32 %v34, %v152
  %v181 = vadd.f32 %v35, %v157
  %v182 = vadd.f32 %v36, %v160
  %v183 = vadd.f32 %v37, %v165
  %v184 = vadd.f32 %v38, %v168
  %v185 = vadd.f32 %v39, %v173
  %v186 = vadd.f32 %v40, %v176
  %187 = vst [vmem:[#allocation2] sm:$0xff] %v179
  %188 = vst [vmem:[#allocation2 + $0x8] sm:$0xff] %v180
  %189 = vst [vmem:[#allocation2 + $0x10] sm:$0xff] %v181
  %190 = vst [vmem:[#allocation2 + $0x18] sm:$0xff] %v182
  %191 = vst [vmem:[#allocation2 + $0x20] sm:$0xff] %v183
  %192 = vst [vmem:[#allocation2 + $0x28] sm:$0xff] %v184
  %193 = vst [vmem:[#allocation2 + $0x30] sm:$0xff] %v185
  %194 = vst [vmem:[#allocation2 + $0x38] sm:$0xff] %v186
  // Predicated region
  $region26: #{mixhop_forward.11} parent=0 // pred_check
    %p195 = pneg %p21
  $region27: #{mixhop_forward.11} parent=0 // pred_check_branch
    %197 = sbr.rel (%p195) target = $region29
  $region28: #{mixhop_forward.11} parent=0 // pred_region
    %v198 = vld [vmem:[%s2] sm:$0xf]
    %v199 = vld [vmem:[%s2 + $0x4] sm:$0xf]
    %v200 = vld [vmem:[%s2 + $0x8] sm:$0xf]
    %v201 = vld [vmem:[%s2 + $0xc] sm:$0xf]
    %v202 = vld [vmem:[%s2 + $0x10] sm:$0xf]
    %v203 = vld [vmem:[%s2 + $0x14] sm:$0xf]
    %v204 = vld [vmem:[%s2 + $0x18] sm:$0xf]
    %v205 = vld [vmem:[%s2 + $0x1c] sm:$0xf]
    %v206 = vunpack.c.l.bf16 %v198
    %v207 = vunpack.c.l.bf16 %v199
    %v208 = vunpack.c.l.bf16 %v200
    %v209 = vunpack.c.l.bf16 %v201
    %v210 = vunpack.c.l.bf16 %v202
    %v211 = vunpack.c.l.bf16 %v203
    %v212 = vunpack.c.l.bf16 %v204
    %v213 = vunpack.c.l.bf16 %v205
    %v214 = vlaneseq
    %v215 = vand.u32 %v214, 127
    %vm216 = vcmp.ge.s32.totalorder %v215, 64
    %v217 = vld [vmem:[#allocation2] sm:$0xff]
    %v218 = vld [vmem:[#allocation2 + $0x8] sm:$0xff]
    %v219 = vld [vmem:[#allocation2 + $0x10] sm:$0xff]
    %v220 = vld [vmem:[#allocation2 + $0x18] sm:$0xff]
    %v221 = vld [vmem:[#allocation2 + $0x20] sm:$0xff]
    %v222 = vld [vmem:[#allocation2 + $0x28] sm:$0xff]
    %v223 = vld [vmem:[#allocation2 + $0x30] sm:$0xff]
    %v224 = vld [vmem:[#allocation2 + $0x38] sm:$0xff]
    %v225 = vsel %vm216, 1, 0
    %vm226 = vcmp.eq.s32.totalorder %v225, 1
    %v227 = vsel %vm226, %v217, %v206
    %v228 = vsel %vm226, %v218, %v207
    %v229 = vsel %vm226, %v219, %v208
    %v230 = vsel %vm226, %v220, %v209
    %v231 = vsel %vm226, %v221, %v210
    %v232 = vsel %vm226, %v222, %v211
    %v233 = vsel %vm226, %v223, %v212
    %v234 = vsel %vm226, %v224, %v213
    %v235 = vld [vmem:[%s3] sm:$0x1]
    %v237 = vlaneseq
    %v238 = vshrl.u32 %v237, 7
    %v239 = vsub.s32 0, %v238
    %v240 = vrot.slane %v235, %v239
    %v242 = vmul.f32 %v227, %v240
    %v243 = vmul.f32 %v228, %v240
    %v244 = vmul.f32 %v229, %v240
    %v245 = vmul.f32 %v230, %v240
    %v246 = vmul.f32 %v231, %v240
    %v247 = vmul.f32 %v232, %v240
    %v248 = vmul.f32 %v233, %v240
    %v249 = vmul.f32 %v234, %v240
    %v250 = vld [vmem:[%s4] sm:$0x1]
    %v252 = vlaneseq
    %v253 = vshrl.u32 %v252, 7
    %v254 = vsub.s32 0, %v253
    %v255 = vrot.slane %v250, %v254
    %v257 = vadd.f32 %v242, %v255
    %v258 = vadd.f32 %v243, %v255
    %v259 = vadd.f32 %v244, %v255
    %v260 = vadd.f32 %v245, %v255
    %v261 = vadd.f32 %v246, %v255
    %v262 = vadd.f32 %v247, %v255
    %v263 = vadd.f32 %v248, %v255
    %v264 = vadd.f32 %v249, %v255
    %v265 = vmax.f32 %v257, 0.0
    %v266 = vmax.f32 %v258, 0.0
    %v267 = vmax.f32 %v259, 0.0
    %v268 = vmax.f32 %v260, 0.0
    %v269 = vmax.f32 %v261, 0.0
    %v270 = vmax.f32 %v262, 0.0
    %v271 = vmax.f32 %v263, 0.0
    %v272 = vmax.f32 %v264, 0.0
    %v273 = vpack.c.bf16 %v266, %v265
    %v274 = vpack.c.bf16 %v268, %v267
    %v275 = vpack.c.bf16 %v270, %v269
    %v276 = vpack.c.bf16 %v272, %v271
    %v281 = vunpack.c.l.b16 %v273
    %v282 = vunpack.c.h.b16 %v273
    %v283 = vunpack.c.l.b16 %v274
    %v284 = vunpack.c.h.b16 %v274
    %v285 = vunpack.c.l.b16 %v275
    %v286 = vunpack.c.h.b16 %v275
    %v287 = vunpack.c.l.b16 %v276
    %v288 = vunpack.c.h.b16 %v276
    %v289 = vpack.c.b16 %v281, %v281
    %v290 = vpack.c.b16 %v282, %v282
    %v291 = vpack.c.b16 %v283, %v283
    %v292 = vpack.c.b16 %v284, %v284
    %v293 = vpack.c.b16 %v285, %v285
    %v294 = vpack.c.b16 %v286, %v286
    %v295 = vpack.c.b16 %v287, %v287
    %v296 = vpack.c.b16 %v288, %v288
    %305 = vst [vmem:[%s5] sm:$0xf] %v289
    %306 = vst [vmem:[%s5 + $0x4] sm:$0xf] %v290
    %307 = vst [vmem:[%s5 + $0x8] sm:$0xf] %v291
    %308 = vst [vmem:[%s5 + $0xc] sm:$0xf] %v292
    %309 = vst [vmem:[%s5 + $0x10] sm:$0xf] %v293
    %310 = vst [vmem:[%s5 + $0x14] sm:$0xf] %v294
    %311 = vst [vmem:[%s5 + $0x18] sm:$0xf] %v295
    %312 = vst [vmem:[%s5 + $0x1c] sm:$0xf] %v296
  $region29: #{mixhop_forward.11} parent=0 // pred_fallthru
    _
  // Predicated region
  $region30: #{mixhop_forward.11} parent=0 // pred_check
    _
  $region31: #{mixhop_forward.11} parent=0 // pred_check_branch
    %314 = sbr.rel (0) target = $region33
  $region32: #{mixhop_forward.11} parent=0 // pred_region
    _
  $region33: #{mixhop_forward.11} parent=0 // pred_fallthru
    _
  // Predicated region
  $region34: #{mixhop_forward.11} parent=0 // pred_check
    _
  $region35: #{mixhop_forward.11} parent=0 // pred_check_branch
    %316 = sbr.rel (0) target = $region37
  $region36: #{mixhop_forward.11} parent=0 // pred_region
    _
  $region37: #{mixhop_forward.11} parent=0 // pred_fallthru
    _

// kernel: mixhop_forward.12
$region0: #{mixhop_forward.12}
  #allocation0 [shape = 'u32[]', space=smem, size = 0x4, offset = 0x4, fixed_abs, tag = 'smem constant byte address 0x4 - core index']
  #allocation1 [shape = 'u32[144,128]{1,0:T(1,128)}', space=vmem, size = 0x12000, scoped, tag = 'internal scratch']
  %s0 = inlined_call_operand.vmem [shape: bf16[64,128], index: 0, kind: input, shape index: {}]
  %s1 = inlined_call_operand.vmem [shape: bf16[128,128], index: 1, kind: input, shape index: {}]
  %s2 = inlined_call_operand.vmem [shape: f32[1,128], index: 2, kind: input, shape index: {}]
  %s3 = inlined_call_operand.vmem [shape: bf16[64,128], index: 3, kind: output, shape index: {}]
  %s4 = sld [smem:[#allocation0]]
  $region22: #{mixhop_forward.12} parent=0
    _
  %s6 = ssub.s32 1, %s4
  %s7 = scalar_select 0, %s6, %s4
  // Predicated region
  $region2: #{mixhop_forward.12} parent=0 // pred_check
    _
  $region3: #{mixhop_forward.12} parent=0 // pred_check_branch
    %9 = sbr.rel (0) target = $region5
  $region4: #{mixhop_forward.12} parent=0 // pred_region
    _
  $region5: #{mixhop_forward.12} parent=0 // pred_fallthru
    _
  // Predicated region
  $region6: #{mixhop_forward.12} parent=0 // pred_check
    _
  $region7: #{mixhop_forward.12} parent=0 // pred_check_branch
    %11 = sbr.rel (0) target = $region9
  $region8: #{mixhop_forward.12} parent=0 // pred_region
    _
  $region9: #{mixhop_forward.12} parent=0 // pred_fallthru
    _
  // Predicated region
  $region10: #{mixhop_forward.12} parent=0 // pred_check
    _
  $region11: #{mixhop_forward.12} parent=0 // pred_check_branch
    %13 = sbr.rel (0) target = $region13
  $region12: #{mixhop_forward.12} parent=0 // pred_region
    _
  $region13: #{mixhop_forward.12} parent=0 // pred_fallthru
    _
  %v15 = vld [vmem:[%s0] sm:$0xf]
  %v16 = vld [vmem:[%s0 + $0x4] sm:$0xf]
  %v17 = vld [vmem:[%s0 + $0x8] sm:$0xf]
  %v18 = vld [vmem:[%s0 + $0xc] sm:$0xf]
  %v19 = vld [vmem:[%s0 + $0x10] sm:$0xf]
  %v20 = vld [vmem:[%s0 + $0x14] sm:$0xf]
  %v21 = vld [vmem:[%s0 + $0x18] sm:$0xf]
  %v22 = vld [vmem:[%s0 + $0x1c] sm:$0xf]
  %v23 = vld [vmem:[%s1] sm:$0xf]
  %v24 = vld [vmem:[%s1 + $0x4] sm:$0xf]
  %v25 = vld [vmem:[%s1 + $0x8] sm:$0xf]
  %v26 = vld [vmem:[%s1 + $0xc] sm:$0xf]
  %v27 = vld [vmem:[%s1 + $0x10] sm:$0xf]
  %v28 = vld [vmem:[%s1 + $0x14] sm:$0xf]
  %v29 = vld [vmem:[%s1 + $0x18] sm:$0xf]
  %v30 = vld [vmem:[%s1 + $0x1c] sm:$0xf]
  %v31 = vld [vmem:[%s1 + $0x20] sm:$0xf]
  %v32 = vld [vmem:[%s1 + $0x24] sm:$0xf]
  %v33 = vld [vmem:[%s1 + $0x28] sm:$0xf]
  %v34 = vld [vmem:[%s1 + $0x2c] sm:$0xf]
  %v35 = vld [vmem:[%s1 + $0x30] sm:$0xf]
  %v36 = vld [vmem:[%s1 + $0x34] sm:$0xf]
  %v37 = vld [vmem:[%s1 + $0x38] sm:$0xf]
  %v38 = vld [vmem:[%s1 + $0x3c] sm:$0xf]
  %v39 = vld [vmem:[%s2] sm:$0x1]
  %v41 = vlaneseq
  %v42 = vshrl.u32 %v41, 7
  %v43 = vsub.s32 0, %v42
  %v44 = vrot.slane %v39, %v43
  %v54 = vunpack.c.l.b16 %v15
  %v55 = vunpack.c.l.b16 %v16
  %v56 = vunpack.c.l.b16 %v17
  %v57 = vunpack.c.l.b16 %v18
  %v58 = vunpack.c.l.b16 %v19
  %v59 = vunpack.c.l.b16 %v20
  %v60 = vunpack.c.l.b16 %v21
  %v61 = vunpack.c.l.b16 %v22
  %v62 = vpack.c.b16 %v55, %v54
  %v63 = vpack.c.b16 %v57, %v56
  %v64 = vpack.c.b16 %v59, %v58
  %v65 = vpack.c.b16 %v61, %v60
  %v86 = vunpack.c.l.b16 %v23
  %v87 = vunpack.c.l.b16 %v24
  %v88 = vunpack.c.l.b16 %v25
  %v89 = vunpack.c.l.b16 %v26
  %v90 = vunpack.c.l.b16 %v27
  %v91 = vunpack.c.l.b16 %v28
  %v92 = vunpack.c.l.b16 %v29
  %v93 = vunpack.c.l.b16 %v30
  %v94 = vunpack.c.l.b16 %v31
  %v95 = vunpack.c.l.b16 %v32
  %v96 = vunpack.c.l.b16 %v33
  %v97 = vunpack.c.l.b16 %v34
  %v98 = vunpack.c.l.b16 %v35
  %v99 = vunpack.c.l.b16 %v36
  %v100 = vunpack.c.l.b16 %v37
  %v101 = vunpack.c.l.b16 %v38
  %v102 = vpack.c.b16 %v87, %v86
  %v103 = vpack.c.b16 %v89, %v88
  %v104 = vpack.c.b16 %v91, %v90
  %v105 = vpack.c.b16 %v93, %v92
  %v106 = vpack.c.b16 %v95, %v94
  %v107 = vpack.c.b16 %v97, %v96
  %v108 = vpack.c.b16 %v99, %v98
  %v109 = vpack.c.b16 %v101, %v100
  %118 = vmatprep.subr.bf16.mxu0 0
  %119 = vmatpush1.bf16.msra.mxu0 %v102
  %120 = vmatprep.subr.bf16.mxu0 0
  %121 = vmatpush1.bf16.msra.mxu0 %v103
  %122 = vmatprep.subr.bf16.mxu0 0
  %123 = vmatpush1.bf16.msra.mxu0 %v104
  %124 = vmatprep.subr.bf16.mxu0 0
  %125 = vmatpush1.bf16.msra.mxu0 %v105
  %126 = vmatprep.subr.bf16.mxu0 0
  %127 = vmatpush1.bf16.msra.mxu0 %v106
  %128 = vmatprep.subr.bf16.mxu0 0
  %129 = vmatpush1.bf16.msra.mxu0 %v107
  %130 = vmatprep.subr.bf16.mxu0 0
  %131 = vmatpush1.bf16.msra.mxu0 %v108
  %132 = vmatprep.subr.bf16.mxu0 0
  %133 = vmatpush1.bf16.msra.mxu0 %v109
  %134 = vmatprep.subr.bf16.mxu0 0
  %135 = vmatpush1.bf16.msra.mxu0 0
  %136 = vmatprep.subr.bf16.mxu0 0
  %137 = vmatpush1.bf16.msra.mxu0 0
  %138 = vmatprep.subr.bf16.mxu0 0
  %139 = vmatpush1.bf16.msra.mxu0 0
  %140 = vmatprep.subr.bf16.mxu0 0
  %141 = vmatpush1.bf16.msra.mxu0 0
  %142 = vmatprep.subr.bf16.mxu0 0
  %143 = vmatpush1.bf16.msra.mxu0 0
  %144 = vmatprep.subr.bf16.mxu0 0
  %145 = vmatpush1.bf16.msra.mxu0 0
  %146 = vmatprep.subr.bf16.mxu0 0
  %147 = vmatpush1.bf16.msra.mxu0 0
  %148 = vmatprep.subr.bf16.mxu0 0
  %149 = vmatpush1.bf16.msra.mxu0 0
  %150 = vmatprep.mubr.bf16.mxu0 0
  %151 = vmatmul.mubr.bf16.gmra.mrb[0].mxu0 %v62
  %v152 = vpop.f32.mrb[0].mxu0
  %v153 = vadd.f32 %v44, %v152
  %v154 = vpop.f32.mrb[0].mxu0
  %v155 = vpop.f32.mrb[0].mxu0
  %v156 = vadd.f32 %v44, %v155
  %v157 = vpop.f32.mrb[0].mxu0
  %158 = vmatprep.mubr.bf16.mxu0 0
  %159 = vmatmul.mubr.bf16.gmra.mrb[0].mxu0 %v63
  %v160 = vpop.f32.mrb[0].mxu0
  %v161 = vadd.f32 %v44, %v160
  %v162 = vpop.f32.mrb[0].mxu0
  %v163 = vpop.f32.mrb[0].mxu0
  %v164 = vadd.f32 %v44, %v163
  %v165 = vpop.f32.mrb[0].mxu0
  %166 = vmatprep.mubr.bf16.mxu0 0
  %167 = vmatmul.mubr.bf16.gmra.mrb[0].mxu0 %v64
  %v168 = vpop.f32.mrb[0].mxu0
  %v169 = vadd.f32 %v44, %v168
  %v170 = vpop.f32.mrb[0].mxu0
  %v171 = vpop.f32.mrb[0].mxu0
  %v172 = vadd.f32 %v44, %v171
  %v173 = vpop.f32.mrb[0].mxu0
  %174 = vmatprep.mubr.bf16.mxu0 0
  %175 = vmatmul.mubr.bf16.gmra.mrb[0].mxu0 %v65
  %v176 = vpop.f32.mrb[0].mxu0
  %v177 = vadd.f32 %v44, %v176
  %v178 = vpop.f32.mrb[0].mxu0
  %v179 = vpop.f32.mrb[0].mxu0
  %v180 = vadd.f32 %v44, %v179
  %v181 = vpop.f32.mrb[0].mxu0
  %182 = vdwg.mxu0
  %v183 = vpack.c.bf16 %v156, %v153
  %v184 = vpack.c.bf16 %v164, %v161
  %v185 = vpack.c.bf16 %v172, %v169
  %v186 = vpack.c.bf16 %v180, %v177
  %v191 = vunpack.c.l.b16 %v183
  %v192 = vunpack.c.h.b16 %v183
  %v193 = vunpack.c.l.b16 %v184
  %v194 = vunpack.c.h.b16 %v184
  %v195 = vunpack.c.l.b16 %v185
  %v196 = vunpack.c.h.b16 %v185
  %v197 = vunpack.c.l.b16 %v186
  %v198 = vunpack.c.h.b16 %v186
  %v199 = vpack.c.b16 %v191, %v191
  %v200 = vpack.c.b16 %v192, %v192
  %v201 = vpack.c.b16 %v193, %v193
  %v202 = vpack.c.b16 %v194, %v194
  %v203 = vpack.c.b16 %v195, %v195
  %v204 = vpack.c.b16 %v196, %v196
  %v205 = vpack.c.b16 %v197, %v197
  %v206 = vpack.c.b16 %v198, %v198
  %215 = vst [vmem:[%s3] sm:$0xf] %v199
  %216 = vst [vmem:[%s3 + $0x4] sm:$0xf] %v200
  %217 = vst [vmem:[%s3 + $0x8] sm:$0xf] %v201
  %218 = vst [vmem:[%s3 + $0xc] sm:$0xf] %v202
  %219 = vst [vmem:[%s3 + $0x10] sm:$0xf] %v203
  %220 = vst [vmem:[%s3 + $0x14] sm:$0xf] %v204
  %221 = vst [vmem:[%s3 + $0x18] sm:$0xf] %v205
  %222 = vst [vmem:[%s3 + $0x1c] sm:$0xf] %v206
  // Predicated region
  $region14: #{mixhop_forward.12} parent=0 // pred_check
    _
  $region15: #{mixhop_forward.12} parent=0 // pred_check_branch
    %224 = sbr.rel (0) target = $region17
  $region16: #{mixhop_forward.12} parent=0 // pred_region
    _
  $region17: #{mixhop_forward.12} parent=0 // pred_fallthru
    _
  // Predicated region
  $region18: #{mixhop_forward.12} parent=0 // pred_check
    _
  $region19: #{mixhop_forward.12} parent=0 // pred_check_branch
    %226 = sbr.rel (0) target = $region21
  $region20: #{mixhop_forward.12} parent=0 // pred_region
    _
  $region21: #{mixhop_forward.12} parent=0 // pred_fallthru
    _

// kernel: mixhop_forward.16
$region0: #{mixhop_forward.16}
  #allocation0 [shape = 'u32[]', space=smem, size = 0x4, offset = 0x4, fixed_abs, tag = 'smem constant byte address 0x4 - core index']
  #allocation1 [shape = 'u32[144,128]{1,0:T(1,128)}', space=vmem, size = 0x12000, scoped, tag = 'internal scratch']
  #allocation2 [shape = 'f32[64,128]{1,0:T(8,128)}', space=vmem, size = 0x8000, scoped, tag = 'scratch operand']
  %s0 = inlined_call_operand.vmem [shape: bf16[64,64], index: 0, kind: input, shape index: {}]
  %s1 = inlined_call_operand.vmem [shape: bf16[64,128], index: 1, kind: input, shape index: {}, may-alias: {1,2}]
  %s2 = inlined_call_operand.vmem [shape: bf16[64,128], index: 2, kind: input, shape index: {}, may-alias: {1,2}]
  %s3 = inlined_call_operand.vmem [shape: bf16[64,128], index: 3, kind: output, shape index: {}]
  %s4 = sld [smem:[#allocation0]]
  $region30: #{mixhop_forward.16} parent=0
    _
  %s6 = ssub.s32 1, %s4
  %s7 = scalar_select 0, %s6, %s4
  // Predicated region
  $region2: #{mixhop_forward.16} parent=0 // pred_check
    _
  $region3: #{mixhop_forward.16} parent=0 // pred_check_branch
    %9 = sbr.rel (0) target = $region5
  $region4: #{mixhop_forward.16} parent=0 // pred_region
    _
  $region5: #{mixhop_forward.16} parent=0 // pred_fallthru
    _
  // Predicated region
  $region6: #{mixhop_forward.16} parent=0 // pred_check
    _
  $region7: #{mixhop_forward.16} parent=0 // pred_check_branch
    %11 = sbr.rel (0) target = $region9
  $region8: #{mixhop_forward.16} parent=0 // pred_region
    _
  $region9: #{mixhop_forward.16} parent=0 // pred_fallthru
    _
  // Predicated region
  $region10: #{mixhop_forward.16} parent=0 // pred_check
    _
  $region11: #{mixhop_forward.16} parent=0 // pred_check_branch
    %13 = sbr.rel (0) target = $region13
  $region12: #{mixhop_forward.16} parent=0 // pred_region
    _
  $region13: #{mixhop_forward.16} parent=0 // pred_fallthru
    _
  %p15 = scmp.eq.s32.totalorder 0, 0
  // Predicated region
  $region14: #{mixhop_forward.16} parent=0 // pred_check
    %p16 = pneg %p15
  $region15: #{mixhop_forward.16} parent=0 // pred_check_branch
    %18 = sbr.rel (%p16) target = $region17
  $region16: #{mixhop_forward.16} parent=0 // pred_region
    %19 = vst [vmem:[#allocation2] sm:$0xff] 0.0
    %20 = vst [vmem:[#allocation2 + $0x8] sm:$0xff] 0.0
    %21 = vst [vmem:[#allocation2 + $0x10] sm:$0xff] 0.0
    %22 = vst [vmem:[#allocation2 + $0x18] sm:$0xff] 0.0
    %23 = vst [vmem:[#allocation2 + $0x20] sm:$0xff] 0.0
    %24 = vst [vmem:[#allocation2 + $0x28] sm:$0xff] 0.0
    %25 = vst [vmem:[#allocation2 + $0x30] sm:$0xff] 0.0
    %26 = vst [vmem:[#allocation2 + $0x38] sm:$0xff] 0.0
  $region17: #{mixhop_forward.16} parent=0 // pred_fallthru
    _
  %v27 = vld [vmem:[#allocation2] sm:$0xff]
  %v28 = vld [vmem:[#allocation2 + $0x8] sm:$0xff]
  %v29 = vld [vmem:[#allocation2 + $0x10] sm:$0xff]
  %v30 = vld [vmem:[#allocation2 + $0x18] sm:$0xff]
  %v31 = vld [vmem:[#allocation2 + $0x20] sm:$0xff]
  %v32 = vld [vmem:[#allocation2 + $0x28] sm:$0xff]
  %v33 = vld [vmem:[#allocation2 + $0x30] sm:$0xff]
  %v34 = vld [vmem:[#allocation2 + $0x38] sm:$0xff]
  %v35 = vld [vmem:[%s0] sm:$0xf]
  %v36 = vld [vmem:[%s0 + $0x4] sm:$0xf]
  %v37 = vld [vmem:[%s0 + $0x8] sm:$0xf]
  %v38 = vld [vmem:[%s0 + $0xc] sm:$0xf]
  %v39 = vld [vmem:[%s0 + $0x10] sm:$0xf]
  %v40 = vld [vmem:[%s0 + $0x14] sm:$0xf]
  %v41 = vld [vmem:[%s0 + $0x18] sm:$0xf]
  %v42 = vld [vmem:[%s0 + $0x1c] sm:$0xf]
  %v43 = vld [vmem:[%s1] sm:$0xf]
  %v44 = vld [vmem:[%s1 + $0x4] sm:$0xf]
  %v45 = vld [vmem:[%s1 + $0x8] sm:$0xf]
  %v46 = vld [vmem:[%s1 + $0xc] sm:$0xf]
  %v47 = vld [vmem:[%s1 + $0x10] sm:$0xf]
  %v48 = vld [vmem:[%s1 + $0x14] sm:$0xf]
  %v49 = vld [vmem:[%s1 + $0x18] sm:$0xf]
  %v50 = vld [vmem:[%s1 + $0x1c] sm:$0xf]
  %v59 = vunpack.c.l.b16 %v35
  %v60 = vunpack.c.l.b16 %v36
  %v61 = vunpack.c.l.b16 %v37
  %v62 = vunpack.c.l.b16 %v38
  %v63 = vunpack.c.l.b16 %v39
  %v64 = vunpack.c.l.b16 %v40
  %v65 = vunpack.c.l.b16 %v41
  %v66 = vunpack.c.l.b16 %v42
  %v67 = vpack.c.b16 %v60, %v59
  %v68 = vpack.c.b16 %v62, %v61
  %v69 = vpack.c.b16 %v64, %v63
  %v70 = vpack.c.b16 %v66, %v65
  %v79 = vunpack.c.l.b16 %v43
  %v80 = vunpack.c.l.b16 %v44
  %v81 = vunpack.c.l.b16 %v45
  %v82 = vunpack.c.l.b16 %v46
  %v83 = vunpack.c.l.b16 %v47
  %v84 = vunpack.c.l.b16 %v48
  %v85 = vunpack.c.l.b16 %v49
  %v86 = vunpack.c.l.b16 %v50
  %v87 = vpack.c.b16 %v80, %v79
  %v88 = vpack.c.b16 %v82, %v81
  %v89 = vpack.c.b16 %v84, %v83
  %v90 = vpack.c.b16 %v86, %v85
  %vm95 = vcmask 523264
  %v97 = vsel %vm95, %v67, 0
  %v100 = vsel %vm95, %v68, 0
  %v103 = vsel %vm95, %v69, 0
  %v106 = vsel %vm95, %v70, 0
  %108 = vmatprep.subr.bf16.mxu0 0
  %109 = vmatpush1.bf16.msra.mxu0 %v87
  %110 = vmatprep.subr.bf16.mxu0 0
  %111 = vmatpush1.bf16.msra.mxu0 %v88
  %112 = vmatprep.subr.bf16.mxu0 0
  %113 = vmatpush1.bf16.msra.mxu0 %v89
  %114 = vmatprep.subr.bf16.mxu0 0
  %115 = vmatpush1.bf16.msra.mxu0 %v90
  %116 = vmatprep.subr.bf16.mxu0 0
  %117 = vmatpush1.bf16.msra.mxu0 0
  %118 = vmatprep.subr.bf16.mxu0 0
  %119 = vmatpush1.bf16.msra.mxu0 0
  %120 = vmatprep.subr.bf16.mxu0 0
  %121 = vmatpush1.bf16.msra.mxu0 0
  %122 = vmatprep.subr.bf16.mxu0 0
  %123 = vmatpush1.bf16.msra.mxu0 0
  %124 = vmatprep.subr.bf16.mxu0 0
  %125 = vmatpush1.bf16.msra.mxu0 0
  %126 = vmatprep.subr.bf16.mxu0 0
  %127 = vmatpush1.bf16.msra.mxu0 0
  %128 = vmatprep.subr.bf16.mxu0 0
  %129 = vmatpush1.bf16.msra.mxu0 0
  %130 = vmatprep.subr.bf16.mxu0 0
  %131 = vmatpush1.bf16.msra.mxu0 0
  %132 = vmatprep.subr.bf16.mxu0 0
  %133 = vmatpush1.bf16.msra.mxu0 0
  %134 = vmatprep.subr.bf16.mxu0 0
  %135 = vmatpush1.bf16.msra.mxu0 0
  %136 = vmatprep.subr.bf16.mxu0 0
  %137 = vmatpush1.bf16.msra.mxu0 0
  %138 = vmatprep.subr.bf16.mxu0 0
  %139 = vmatpush1.bf16.msra.mxu0 0
  %140 = vmatprep.mubr.bf16.mxu0 0
  %141 = vmatmul.mubr.bf16.gmra.mrb[0].mxu0 %v97
  %v142 = vpop.f32.mrb[0].mxu0
  %v143 = vadd.f32 0.0, %v142
  %v144 = vpop.f32.mrb[0].mxu0
  %v145 = vpop.f32.mrb[0].mxu0
  %v146 = vadd.f32 0.0, %v145
  %v147 = vpop.f32.mrb[0].mxu0
  %148 = vmatprep.mubr.bf16.mxu0 0
  %149 = vmatmul.mubr.bf16.gmra.mrb[0].mxu0 %v100
  %v150 = vpop.f32.mrb[0].mxu0
  %v151 = vadd.f32 0.0, %v150
  %v152 = vpop.f32.mrb[0].mxu0
  %v153 = vpop.f32.mrb[0].mxu0
  %v154 = vadd.f32 0.0, %v153
  %v155 = vpop.f32.mrb[0].mxu0
  %156 = vmatprep.mubr.bf16.mxu0 0
  %157 = vmatmul.mubr.bf16.gmra.mrb[0].mxu0 %v103
  %v158 = vpop.f32.mrb[0].mxu0
  %v159 = vadd.f32 0.0, %v158
  %v160 = vpop.f32.mrb[0].mxu0
  %v161 = vpop.f32.mrb[0].mxu0
  %v162 = vadd.f32 0.0, %v161
  %v163 = vpop.f32.mrb[0].mxu0
  %164 = vmatprep.mubr.bf16.mxu0 0
  %165 = vmatmul.mubr.bf16.gmra.mrb[0].mxu0 %v106
  %v166 = vpop.f32.mrb[0].mxu0
  %v167 = vadd.f32 0.0, %v166
  %v168 = vpop.f32.mrb[0].mxu0
  %v169 = vpop.f32.mrb[0].mxu0
  %v170 = vadd.f32 0.0, %v169
  %v171 = vpop.f32.mrb[0].mxu0
  %172 = vdwg.mxu0
  %v173 = vadd.f32 %v27, %v143
  %v174 = vadd.f32 %v28, %v146
  %v175 = vadd.f32 %v29, %v151
  %v176 = vadd.f32 %v30, %v154
  %v177 = vadd.f32 %v31, %v159
  %v178 = vadd.f32 %v32, %v162
  %v179 = vadd.f32 %v33, %v167
  %v180 = vadd.f32 %v34, %v170
  %181 = vst [vmem:[#allocation2] sm:$0xff] %v173
  %182 = vst [vmem:[#allocation2 + $0x8] sm:$0xff] %v174
  %183 = vst [vmem:[#allocation2 + $0x10] sm:$0xff] %v175
  %184 = vst [vmem:[#allocation2 + $0x18] sm:$0xff] %v176
  %185 = vst [vmem:[#allocation2 + $0x20] sm:$0xff] %v177
  %186 = vst [vmem:[#allocation2 + $0x28] sm:$0xff] %v178
  %187 = vst [vmem:[#allocation2 + $0x30] sm:$0xff] %v179
  %188 = vst [vmem:[#allocation2 + $0x38] sm:$0xff] %v180
  // Predicated region
  $region18: #{mixhop_forward.16} parent=0 // pred_check
    %p189 = pneg %p15
  $region19: #{mixhop_forward.16} parent=0 // pred_check_branch
    %191 = sbr.rel (%p189) target = $region21
  $region20: #{mixhop_forward.16} parent=0 // pred_region
    %v192 = vld [vmem:[%s2] sm:$0xf]
    %v193 = vld [vmem:[%s2 + $0x4] sm:$0xf]
    %v194 = vld [vmem:[%s2 + $0x8] sm:$0xf]
    %v195 = vld [vmem:[%s2 + $0xc] sm:$0xf]
    %v196 = vld [vmem:[%s2 + $0x10] sm:$0xf]
    %v197 = vld [vmem:[%s2 + $0x14] sm:$0xf]
    %v198 = vld [vmem:[%s2 + $0x18] sm:$0xf]
    %v199 = vld [vmem:[%s2 + $0x1c] sm:$0xf]
    %v200 = vunpack.c.l.bf16 %v192
    %v201 = vunpack.c.l.bf16 %v193
    %v202 = vunpack.c.l.bf16 %v194
    %v203 = vunpack.c.l.bf16 %v195
    %v204 = vunpack.c.l.bf16 %v196
    %v205 = vunpack.c.l.bf16 %v197
    %v206 = vunpack.c.l.bf16 %v198
    %v207 = vunpack.c.l.bf16 %v199
    %v208 = vlaneseq
    %v209 = vand.u32 %v208, 127
    %vm210 = vcmp.ge.s32.totalorder %v209, 8
    %v211 = vld [vmem:[#allocation2] sm:$0xff]
    %v212 = vld [vmem:[#allocation2 + $0x8] sm:$0xff]
    %v213 = vld [vmem:[#allocation2 + $0x10] sm:$0xff]
    %v214 = vld [vmem:[#allocation2 + $0x18] sm:$0xff]
    %v215 = vld [vmem:[#allocation2 + $0x20] sm:$0xff]
    %v216 = vld [vmem:[#allocation2 + $0x28] sm:$0xff]
    %v217 = vld [vmem:[#allocation2 + $0x30] sm:$0xff]
    %v218 = vld [vmem:[#allocation2 + $0x38] sm:$0xff]
    %v219 = vsel %vm210, 1, 0
    %vm220 = vcmp.eq.s32.totalorder %v219, 1
    %v221 = vsel %vm220, %v211, %v200
    %v222 = vsel %vm220, %v212, %v201
    %v223 = vsel %vm220, %v213, %v202
    %v224 = vsel %vm220, %v214, %v203
    %v225 = vsel %vm220, %v215, %v204
    %v226 = vsel %vm220, %v216, %v205
    %v227 = vsel %vm220, %v217, %v206
    %v228 = vsel %vm220, %v218, %v207
    %v229 = vpack.c.bf16 %v222, %v221
    %v230 = vpack.c.bf16 %v224, %v223
    %v231 = vpack.c.bf16 %v226, %v225
    %v232 = vpack.c.bf16 %v228, %v227
    %v237 = vunpack.c.l.b16 %v229
    %v238 = vunpack.c.h.b16 %v229
    %v239 = vunpack.c.l.b16 %v230
    %v240 = vunpack.c.h.b16 %v230
    %v241 = vunpack.c.l.b16 %v231
    %v242 = vunpack.c.h.b16 %v231
    %v243 = vunpack.c.l.b16 %v232
    %v244 = vunpack.c.h.b16 %v232
    %v245 = vpack.c.b16 %v237, %v237
    %v246 = vpack.c.b16 %v238, %v238
    %v247 = vpack.c.b16 %v239, %v239
    %v248 = vpack.c.b16 %v240, %v240
    %v249 = vpack.c.b16 %v241, %v241
    %v250 = vpack.c.b16 %v242, %v242
    %v251 = vpack.c.b16 %v243, %v243
    %v252 = vpack.c.b16 %v244, %v244
    %261 = vst [vmem:[%s3] sm:$0xf] %v245
    %262 = vst [vmem:[%s3 + $0x4] sm:$0xf] %v246
    %263 = vst [vmem:[%s3 + $0x8] sm:$0xf] %v247
    %264 = vst [vmem:[%s3 + $0xc] sm:$0xf] %v248
    %265 = vst [vmem:[%s3 + $0x10] sm:$0xf] %v249
    %266 = vst [vmem:[%s3 + $0x14] sm:$0xf] %v250
    %267 = vst [vmem:[%s3 + $0x18] sm:$0xf] %v251
    %268 = vst [vmem:[%s3 + $0x1c] sm:$0xf] %v252
  $region21: #{mixhop_forward.16} parent=0 // pred_fallthru
    _
  // Predicated region
  $region22: #{mixhop_forward.16} parent=0 // pred_check
    _
  $region23: #{mixhop_forward.16} parent=0 // pred_check_branch
    %270 = sbr.rel (0) target = $region25
  $region24: #{mixhop_forward.16} parent=0 // pred_region
    _
  $region25: #{mixhop_forward.16} parent=0 // pred_fallthru
    _
  // Predicated region
  $region26: #{mixhop_forward.16} parent=0 // pred_check
    _
  $region27: #{mixhop_forward.16} parent=0 // pred_check_branch
    %272 = sbr.rel (0) target = $region29
  $region28: #{mixhop_forward.16} parent=0 // pred_region
    _
  $region29: #{mixhop_forward.16} parent=0 // pred_fallthru
    _

// kernel: mixhop_forward.17
$region0: #{mixhop_forward.17}
  #allocation0 [shape = 'u32[]', space=smem, size = 0x4, offset = 0x4, fixed_abs, tag = 'smem constant byte address 0x4 - core index']
  #allocation1 [shape = 'u32[144,128]{1,0:T(1,128)}', space=vmem, size = 0x12000, scoped, tag = 'internal scratch']
  #allocation2 [shape = 'f32[64,128]{1,0:T(8,128)}', space=vmem, size = 0x8000, scoped, tag = 'scratch operand']
  %s0 = inlined_call_operand.vmem [shape: bf16[64,64], index: 0, kind: input, shape index: {}]
  %s1 = inlined_call_operand.vmem [shape: bf16[64,128], index: 1, kind: input, shape index: {}, may-alias: {1,2}]
  %s2 = inlined_call_operand.vmem [shape: bf16[64,128], index: 2, kind: input, shape index: {}, may-alias: {1,2}]
  %s3 = inlined_call_operand.vmem [shape: bf16[128,128], index: 3, kind: input, shape index: {}]
  %s4 = inlined_call_operand.vmem [shape: f32[1,128], index: 4, kind: input, shape index: {}]
  %s5 = inlined_call_operand.vmem [shape: f32[64,128], index: 5, kind: output, shape index: {}]
  %s6 = sld [smem:[#allocation0]]
  $region38: #{mixhop_forward.17} parent=0
    _
  %s8 = ssub.s32 1, %s6
  %s9 = scalar_select 0, %s8, %s6
  // Predicated region
  $region2: #{mixhop_forward.17} parent=0 // pred_check
    _
  $region3: #{mixhop_forward.17} parent=0 // pred_check_branch
    %11 = sbr.rel (0) target = $region5
  $region4: #{mixhop_forward.17} parent=0 // pred_region
    _
  $region5: #{mixhop_forward.17} parent=0 // pred_fallthru
    _
  // Predicated region
  $region6: #{mixhop_forward.17} parent=0 // pred_check
    _
  $region7: #{mixhop_forward.17} parent=0 // pred_check_branch
    %13 = sbr.rel (0) target = $region9
  $region8: #{mixhop_forward.17} parent=0 // pred_region
    _
  $region9: #{mixhop_forward.17} parent=0 // pred_fallthru
    _
  // Predicated region
  $region10: #{mixhop_forward.17} parent=0 // pred_check
    _
  $region11: #{mixhop_forward.17} parent=0 // pred_check_branch
    %15 = sbr.rel (0) target = $region13
  $region12: #{mixhop_forward.17} parent=0 // pred_region
    _
  $region13: #{mixhop_forward.17} parent=0 // pred_fallthru
    _
  // Predicated region
  $region14: #{mixhop_forward.17} parent=0 // pred_check
    _
  $region15: #{mixhop_forward.17} parent=0 // pred_check_branch
    %17 = sbr.rel (0) target = $region17
  $region16: #{mixhop_forward.17} parent=0 // pred_region
    _
  $region17: #{mixhop_forward.17} parent=0 // pred_fallthru
    _
  // Predicated region
  $region18: #{mixhop_forward.17} parent=0 // pred_check
    _
  $region19: #{mixhop_forward.17} parent=0 // pred_check_branch
    %19 = sbr.rel (0) target = $region21
  $region20: #{mixhop_forward.17} parent=0 // pred_region
    _
  $region21: #{mixhop_forward.17} parent=0 // pred_fallthru
    _
  %p21 = scmp.eq.s32.totalorder 0, 0
  // Predicated region
  $region22: #{mixhop_forward.17} parent=0 // pred_check
    %p22 = pneg %p21
  $region23: #{mixhop_forward.17} parent=0 // pred_check_branch
    %24 = sbr.rel (%p22) target = $region25
  $region24: #{mixhop_forward.17} parent=0 // pred_region
    %25 = vst [vmem:[#allocation2] sm:$0xff] 0.0
    %26 = vst [vmem:[#allocation2 + $0x8] sm:$0xff] 0.0
    %27 = vst [vmem:[#allocation2 + $0x10] sm:$0xff] 0.0
    %28 = vst [vmem:[#allocation2 + $0x18] sm:$0xff] 0.0
    %29 = vst [vmem:[#allocation2 + $0x20] sm:$0xff] 0.0
    %30 = vst [vmem:[#allocation2 + $0x28] sm:$0xff] 0.0
    %31 = vst [vmem:[#allocation2 + $0x30] sm:$0xff] 0.0
    %32 = vst [vmem:[#allocation2 + $0x38] sm:$0xff] 0.0
  $region25: #{mixhop_forward.17} parent=0 // pred_fallthru
    _
  %v33 = vld [vmem:[#allocation2] sm:$0xff]
  %v34 = vld [vmem:[#allocation2 + $0x8] sm:$0xff]
  %v35 = vld [vmem:[#allocation2 + $0x10] sm:$0xff]
  %v36 = vld [vmem:[#allocation2 + $0x18] sm:$0xff]
  %v37 = vld [vmem:[#allocation2 + $0x20] sm:$0xff]
  %v38 = vld [vmem:[#allocation2 + $0x28] sm:$0xff]
  %v39 = vld [vmem:[#allocation2 + $0x30] sm:$0xff]
  %v40 = vld [vmem:[#allocation2 + $0x38] sm:$0xff]
  %v41 = vld [vmem:[%s0] sm:$0xf]
  %v42 = vld [vmem:[%s0 + $0x4] sm:$0xf]
  %v43 = vld [vmem:[%s0 + $0x8] sm:$0xf]
  %v44 = vld [vmem:[%s0 + $0xc] sm:$0xf]
  %v45 = vld [vmem:[%s0 + $0x10] sm:$0xf]
  %v46 = vld [vmem:[%s0 + $0x14] sm:$0xf]
  %v47 = vld [vmem:[%s0 + $0x18] sm:$0xf]
  %v48 = vld [vmem:[%s0 + $0x1c] sm:$0xf]
  %v49 = vld [vmem:[%s1] sm:$0xf]
  %v50 = vld [vmem:[%s1 + $0x4] sm:$0xf]
  %v51 = vld [vmem:[%s1 + $0x8] sm:$0xf]
  %v52 = vld [vmem:[%s1 + $0xc] sm:$0xf]
  %v53 = vld [vmem:[%s1 + $0x10] sm:$0xf]
  %v54 = vld [vmem:[%s1 + $0x14] sm:$0xf]
  %v55 = vld [vmem:[%s1 + $0x18] sm:$0xf]
  %v56 = vld [vmem:[%s1 + $0x1c] sm:$0xf]
  %v65 = vunpack.c.l.b16 %v41
  %v66 = vunpack.c.l.b16 %v42
  %v67 = vunpack.c.l.b16 %v43
  %v68 = vunpack.c.l.b16 %v44
  %v69 = vunpack.c.l.b16 %v45
  %v70 = vunpack.c.l.b16 %v46
  %v71 = vunpack.c.l.b16 %v47
  %v72 = vunpack.c.l.b16 %v48
  %v73 = vpack.c.b16 %v66, %v65
  %v74 = vpack.c.b16 %v68, %v67
  %v75 = vpack.c.b16 %v70, %v69
  %v76 = vpack.c.b16 %v72, %v71
  %v85 = vunpack.c.l.b16 %v49
  %v86 = vunpack.c.l.b16 %v50
  %v87 = vunpack.c.l.b16 %v51
  %v88 = vunpack.c.l.b16 %v52
  %v89 = vunpack.c.l.b16 %v53
  %v90 = vunpack.c.l.b16 %v54
  %v91 = vunpack.c.l.b16 %v55
  %v92 = vunpack.c.l.b16 %v56
  %v93 = vpack.c.b16 %v86, %v85
  %v94 = vpack.c.b16 %v88, %v87
  %v95 = vpack.c.b16 %v90, %v89
  %v96 = vpack.c.b16 %v92, %v91
  %vm101 = vcmask 523264
  %v103 = vsel %vm101, %v73, 0
  %v106 = vsel %vm101, %v74, 0
  %v109 = vsel %vm101, %v75, 0
  %v112 = vsel %vm101, %v76, 0
  %114 = vmatprep.subr.bf16.mxu0 0
  %115 = vmatpush1.bf16.msra.mxu0 %v93
  %116 = vmatprep.subr.bf16.mxu0 0
  %117 = vmatpush1.bf16.msra.mxu0 %v94
  %118 = vmatprep.subr.bf16.mxu0 0
  %119 = vmatpush1.bf16.msra.mxu0 %v95
  %120 = vmatprep.subr.bf16.mxu0 0
  %121 = vmatpush1.bf16.msra.mxu0 %v96
  %122 = vmatprep.subr.bf16.mxu0 0
  %123 = vmatpush1.bf16.msra.mxu0 0
  %124 = vmatprep.subr.bf16.mxu0 0
  %125 = vmatpush1.bf16.msra.mxu0 0
  %126 = vmatprep.subr.bf16.mxu0 0
  %127 = vmatpush1.bf16.msra.mxu0 0
  %128 = vmatprep.subr.bf16.mxu0 0
  %129 = vmatpush1.bf16.msra.mxu0 0
  %130 = vmatprep.subr.bf16.mxu0 0
  %131 = vmatpush1.bf16.msra.mxu0 0
  %132 = vmatprep.subr.bf16.mxu0 0
  %133 = vmatpush1.bf16.msra.mxu0 0
  %134 = vmatprep.subr.bf16.mxu0 0
  %135 = vmatpush1.bf16.msra.mxu0 0
  %136 = vmatprep.subr.bf16.mxu0 0
  %137 = vmatpush1.bf16.msra.mxu0 0
  %138 = vmatprep.subr.bf16.mxu0 0
  %139 = vmatpush1.bf16.msra.mxu0 0
  %140 = vmatprep.subr.bf16.mxu0 0
  %141 = vmatpush1.bf16.msra.mxu0 0
  %142 = vmatprep.subr.bf16.mxu0 0
  %143 = vmatpush1.bf16.msra.mxu0 0
  %144 = vmatprep.subr.bf16.mxu0 0
  %145 = vmatpush1.bf16.msra.mxu0 0
  %146 = vmatprep.mubr.bf16.mxu0 0
  %147 = vmatmul.mubr.bf16.gmra.mrb[0].mxu0 %v103
  %v148 = vpop.f32.mrb[0].mxu0
  %v149 = vadd.f32 0.0, %v148
  %v150 = vpop.f32.mrb[0].mxu0
  %v151 = vpop.f32.mrb[0].mxu0
  %v152 = vadd.f32 0.0, %v151
  %v153 = vpop.f32.mrb[0].mxu0
  %154 = vmatprep.mubr.bf16.mxu0 0
  %155 = vmatmul.mubr.bf16.gmra.mrb[0].mxu0 %v106
  %v156 = vpop.f32.mrb[0].mxu0
  %v157 = vadd.f32 0.0, %v156
  %v158 = vpop.f32.mrb[0].mxu0
  %v159 = vpop.f32.mrb[0].mxu0
  %v160 = vadd.f32 0.0, %v159
  %v161 = vpop.f32.mrb[0].mxu0
  %162 = vmatprep.mubr.bf16.mxu0 0
  %163 = vmatmul.mubr.bf16.gmra.mrb[0].mxu0 %v109
  %v164 = vpop.f32.mrb[0].mxu0
  %v165 = vadd.f32 0.0, %v164
  %v166 = vpop.f32.mrb[0].mxu0
  %v167 = vpop.f32.mrb[0].mxu0
  %v168 = vadd.f32 0.0, %v167
  %v169 = vpop.f32.mrb[0].mxu0
  %170 = vmatprep.mubr.bf16.mxu0 0
  %171 = vmatmul.mubr.bf16.gmra.mrb[0].mxu0 %v112
  %v172 = vpop.f32.mrb[0].mxu0
  %v173 = vadd.f32 0.0, %v172
  %v174 = vpop.f32.mrb[0].mxu0
  %v175 = vpop.f32.mrb[0].mxu0
  %v176 = vadd.f32 0.0, %v175
  %v177 = vpop.f32.mrb[0].mxu0
  %178 = vdwg.mxu0
  %v179 = vadd.f32 %v33, %v149
  %v180 = vadd.f32 %v34, %v152
  %v181 = vadd.f32 %v35, %v157
  %v182 = vadd.f32 %v36, %v160
  %v183 = vadd.f32 %v37, %v165
  %v184 = vadd.f32 %v38, %v168
  %v185 = vadd.f32 %v39, %v173
  %v186 = vadd.f32 %v40, %v176
  %187 = vst [vmem:[#allocation2] sm:$0xff] %v179
  %188 = vst [vmem:[#allocation2 + $0x8] sm:$0xff] %v180
  %189 = vst [vmem:[#allocation2 + $0x10] sm:$0xff] %v181
  %190 = vst [vmem:[#allocation2 + $0x18] sm:$0xff] %v182
  %191 = vst [vmem:[#allocation2 + $0x20] sm:$0xff] %v183
  %192 = vst [vmem:[#allocation2 + $0x28] sm:$0xff] %v184
  %193 = vst [vmem:[#allocation2 + $0x30] sm:$0xff] %v185
  %194 = vst [vmem:[#allocation2 + $0x38] sm:$0xff] %v186
  // Predicated region
  $region26: #{mixhop_forward.17} parent=0 // pred_check
    %p195 = pneg %p21
  $region27: #{mixhop_forward.17} parent=0 // pred_check_branch
    %197 = sbr.rel (%p195) target = $region29
  $region28: #{mixhop_forward.17} parent=0 // pred_region
    %v198 = vld [vmem:[%s2] sm:$0xf]
    %v199 = vld [vmem:[%s2 + $0x4] sm:$0xf]
    %v200 = vld [vmem:[%s2 + $0x8] sm:$0xf]
    %v201 = vld [vmem:[%s2 + $0xc] sm:$0xf]
    %v202 = vld [vmem:[%s2 + $0x10] sm:$0xf]
    %v203 = vld [vmem:[%s2 + $0x14] sm:$0xf]
    %v204 = vld [vmem:[%s2 + $0x18] sm:$0xf]
    %v205 = vld [vmem:[%s2 + $0x1c] sm:$0xf]
    %v206 = vunpack.c.l.bf16 %v198
    %v207 = vunpack.c.l.bf16 %v199
    %v208 = vunpack.c.l.bf16 %v200
    %v209 = vunpack.c.l.bf16 %v201
    %v210 = vunpack.c.l.bf16 %v202
    %v211 = vunpack.c.l.bf16 %v203
    %v212 = vunpack.c.l.bf16 %v204
    %v213 = vunpack.c.l.bf16 %v205
    %v214 = vlaneseq
    %v215 = vand.u32 %v214, 127
    %vm216 = vcmp.ge.s32.totalorder %v215, 16
    %v217 = vld [vmem:[#allocation2] sm:$0xff]
    %v218 = vld [vmem:[#allocation2 + $0x8] sm:$0xff]
    %v219 = vld [vmem:[#allocation2 + $0x10] sm:$0xff]
    %v220 = vld [vmem:[#allocation2 + $0x18] sm:$0xff]
    %v221 = vld [vmem:[#allocation2 + $0x20] sm:$0xff]
    %v222 = vld [vmem:[#allocation2 + $0x28] sm:$0xff]
    %v223 = vld [vmem:[#allocation2 + $0x30] sm:$0xff]
    %v224 = vld [vmem:[#allocation2 + $0x38] sm:$0xff]
    %v225 = vsel %vm216, 1, 0
    %vm226 = vcmp.eq.s32.totalorder %v225, 1
    %v227 = vsel %vm226, %v217, %v206
    %v228 = vsel %vm226, %v218, %v207
    %v229 = vsel %vm226, %v219, %v208
    %v230 = vsel %vm226, %v220, %v209
    %v231 = vsel %vm226, %v221, %v210
    %v232 = vsel %vm226, %v222, %v211
    %v233 = vsel %vm226, %v223, %v212
    %v234 = vsel %vm226, %v224, %v213
    %v235 = vpack.c.bf16 %v228, %v227
    %v236 = vpack.c.bf16 %v230, %v229
    %v237 = vpack.c.bf16 %v232, %v231
    %v238 = vpack.c.bf16 %v234, %v233
    %v239 = vld [vmem:[%s3] sm:$0xf]
    %v240 = vld [vmem:[%s3 + $0x4] sm:$0xf]
    %v241 = vld [vmem:[%s3 + $0x8] sm:$0xf]
    %v242 = vld [vmem:[%s3 + $0xc] sm:$0xf]
    %v243 = vld [vmem:[%s3 + $0x10] sm:$0xf]
    %v244 = vld [vmem:[%s3 + $0x14] sm:$0xf]
    %v245 = vld [vmem:[%s3 + $0x18] sm:$0xf]
    %v246 = vld [vmem:[%s3 + $0x1c] sm:$0xf]
    %v247 = vld [vmem:[%s3 + $0x20] sm:$0xf]
    %v248 = vld [vmem:[%s3 + $0x24] sm:$0xf]
    %v249 = vld [vmem:[%s3 + $0x28] sm:$0xf]
    %v250 = vld [vmem:[%s3 + $0x2c] sm:$0xf]
    %v251 = vld [vmem:[%s3 + $0x30] sm:$0xf]
    %v252 = vld [vmem:[%s3 + $0x34] sm:$0xf]
    %v253 = vld [vmem:[%s3 + $0x38] sm:$0xf]
    %v254 = vld [vmem:[%s3 + $0x3c] sm:$0xf]
    %v255 = vld [vmem:[%s4] sm:$0x1]
    %v257 = vlaneseq
    %v258 = vshrl.u32 %v257, 7
    %v259 = vsub.s32 0, %v258
    %v260 = vrot.slane %v255, %v259
    %v278 = vunpack.c.l.b16 %v239
    %v279 = vunpack.c.l.b16 %v240
    %v280 = vunpack.c.l.b16 %v241
    %v281 = vunpack.c.l.b16 %v242
    %v282 = vunpack.c.l.b16 %v243
    %v283 = vunpack.c.l.b16 %v244
    %v284 = vunpack.c.l.b16 %v245
    %v285 = vunpack.c.l.b16 %v246
    %v286 = vunpack.c.l.b16 %v247
    %v287 = vunpack.c.l.b16 %v248
    %v288 = vunpack.c.l.b16 %v249
    %v289 = vunpack.c.l.b16 %v250
    %v290 = vunpack.c.l.b16 %v251
    %v291 = vunpack.c.l.b16 %v252
    %v292 = vunpack.c.l.b16 %v253
    %v293 = vunpack.c.l.b16 %v254
    %v294 = vpack.c.b16 %v279, %v278
    %v295 = vpack.c.b16 %v281, %v280
    %v296 = vpack.c.b16 %v283, %v282
    %v297 = vpack.c.b16 %v285, %v284
    %v298 = vpack.c.b16 %v287, %v286
    %v299 = vpack.c.b16 %v289, %v288
    %v300 = vpack.c.b16 %v291, %v290
    %v301 = vpack.c.b16 %v293, %v292
    %310 = vmatprep.subr.bf16.mxu0 0
    %311 = vmatpush1.bf16.msra.mxu0 %v294
    %312 = vmatprep.subr.bf16.mxu0 0
    %313 = vmatpush1.bf16.msra.mxu0 %v295
    %314 = vmatprep.subr.bf16.mxu0 0
    %315 = vmatpush1.bf16.msra.mxu0 %v296
    %316 = vmatprep.subr.bf16.mxu0 0
    %317 = vmatpush1.bf16.msra.mxu0 %v297
    %318 = vmatprep.subr.bf16.mxu0 0
    %319 = vmatpush1.bf16.msra.mxu0 %v298
    %320 = vmatprep.subr.bf16.mxu0 0
    %321 = vmatpush1.bf16.msra.mxu0 %v299
    %322 = vmatprep.subr.bf16.mxu0 0
    %323 = vmatpush1.bf16.msra.mxu0 %v300
    %324 = vmatprep.subr.bf16.mxu0 0
    %325 = vmatpush1.bf16.msra.mxu0 %v301
    %326 = vmatprep.subr.bf16.mxu0 0
    %327 = vmatpush1.bf16.msra.mxu0 0
    %328 = vmatprep.subr.bf16.mxu0 0
    %329 = vmatpush1.bf16.msra.mxu0 0
    %330 = vmatprep.subr.bf16.mxu0 0
    %331 = vmatpush1.bf16.msra.mxu0 0
    %332 = vmatprep.subr.bf16.mxu0 0
    %333 = vmatpush1.bf16.msra.mxu0 0
    %334 = vmatprep.subr.bf16.mxu0 0
    %335 = vmatpush1.bf16.msra.mxu0 0
    %336 = vmatprep.subr.bf16.mxu0 0
    %337 = vmatpush1.bf16.msra.mxu0 0
    %338 = vmatprep.subr.bf16.mxu0 0
    %339 = vmatpush1.bf16.msra.mxu0 0
    %340 = vmatprep.subr.bf16.mxu0 0
    %341 = vmatpush1.bf16.msra.mxu0 0
    %342 = vmatprep.mubr.bf16.mxu0 0
    %343 = vmatmul.mubr.bf16.gmra.mrb[0].mxu0 %v235
    %v344 = vpop.f32.mrb[0].mxu0
    %v345 = vadd.f32 %v260, %v344
    %v346 = vpop.f32.mrb[0].mxu0
    %v347 = vpop.f32.mrb[0].mxu0
    %v348 = vadd.f32 %v260, %v347
    %v349 = vpop.f32.mrb[0].mxu0
    %350 = vmatprep.mubr.bf16.mxu0 0
    %351 = vmatmul.mubr.bf16.gmra.mrb[0].mxu0 %v236
    %v352 = vpop.f32.mrb[0].mxu0
    %v353 = vadd.f32 %v260, %v352
    %v354 = vpop.f32.mrb[0].mxu0
    %v355 = vpop.f32.mrb[0].mxu0
    %v356 = vadd.f32 %v260, %v355
    %v357 = vpop.f32.mrb[0].mxu0
    %358 = vmatprep.mubr.bf16.mxu0 0
    %359 = vmatmul.mubr.bf16.gmra.mrb[0].mxu0 %v237
    %v360 = vpop.f32.mrb[0].mxu0
    %v361 = vadd.f32 %v260, %v360
    %v362 = vpop.f32.mrb[0].mxu0
    %v363 = vpop.f32.mrb[0].mxu0
    %v364 = vadd.f32 %v260, %v363
    %v365 = vpop.f32.mrb[0].mxu0
    %366 = vmatprep.mubr.bf16.mxu0 0
    %367 = vmatmul.mubr.bf16.gmra.mrb[0].mxu0 %v238
    %v368 = vpop.f32.mrb[0].mxu0
    %v369 = vadd.f32 %v260, %v368
    %v370 = vpop.f32.mrb[0].mxu0
    %v371 = vpop.f32.mrb[0].mxu0
    %v372 = vadd.f32 %v260, %v371
    %v373 = vpop.f32.mrb[0].mxu0
    %374 = vdwg.mxu0
    %375 = vst [vmem:[%s5] sm:$0xff] %v345
    %376 = vst [vmem:[%s5 + $0x8] sm:$0xff] %v348
    %377 = vst [vmem:[%s5 + $0x10] sm:$0xff] %v353
    %378 = vst [vmem:[%s5 + $0x18] sm:$0xff] %v356
    %379 = vst [vmem:[%s5 + $0x20] sm:$0xff] %v361
    %380 = vst [vmem:[%s5 + $0x28] sm:$0xff] %v364
    %381 = vst [vmem:[%s5 + $0x30] sm:$0xff] %v369
    %382 = vst [vmem:[%s5 + $0x38] sm:$0xff] %v372
  $region29: #{mixhop_forward.17} parent=0 // pred_fallthru
    _
  // Predicated region
  $region30: #{mixhop_forward.17} parent=0 // pred_check
    _
  $region31: #{mixhop_forward.17} parent=0 // pred_check_branch
    %384 = sbr.rel (0) target = $region33
  $region32: #{mixhop_forward.17} parent=0 // pred_region
    _
  $region33: #{mixhop_forward.17} parent=0 // pred_fallthru
    _
  // Predicated region
  $region34: #{mixhop_forward.17} parent=0 // pred_check
    _
  $region35: #{mixhop_forward.17} parent=0 // pred_check_branch
    %386 = sbr.rel (0) target = $region37
  $region36: #{mixhop_forward.17} parent=0 // pred_region
    _
  $region37: #{mixhop_forward.17} parent=0 // pred_fallthru
    _

</llo_original>
